<compile_context>
chip_gen: v6e
topology: v6e:2x2x1
jax: 0.10.0
libtpu: 0.0.40
codegen_flags: <defaults>
</compile_context>

<pallas_src>
import functools

import jax
import jax.numpy as jnp
from jax.experimental import pallas as pl
from jax.experimental.pallas import tpu as pltpu


# ----------------------------- config (small, synthetic) --------------------
NUM_COSMO_PARAMS = 5
NUM_BIAS_PARAMS = 3
NUM_PARAMS = NUM_COSMO_PARAMS + NUM_BIAS_PARAMS      # = 8
MLP_DIMS = [32, 32, 32]                              # mlp_dims
NUM_MLP_BLOCKS = 2                                   # num_mlp_blocks
NUM_BLOCK_LAYERS = 2                                 # num_block_layers
USE_SKIP = True                                      # use_skip_connection
NUM_KBINS = 16
OUTPUT_DIM = NUM_KBINS * 2                           # = 32

BATCH = 512          # >= 512 so each v7x TensorCore gets a full 256-row tile
TILE_M = 256         # one 256-row MXU pass per grid step
K_PAD = 32           # hidden width (contraction pad for inner layers)
N_PAD = 128          # lane-dense padded output width of every matmul

assert all(d == K_PAD for d in MLP_DIMS)
assert NUM_PARAMS <= K_PAD and OUTPUT_DIM <= N_PAD and 2 * K_PAD <= N_PAD
assert BATCH % TILE_M == 0


# ----------------------------- Pallas kernel --------------------------------
def _mlp_kernel(x_ref, w_ref, b_ref, out_ref, *,
                num_blocks, num_block_layers, use_skip, hidden):
    mat = [0]

    def dot(v):
        i = mat[0]
        mat[0] += 1
        k = v.shape[-1]                               # 8 for h1, 32 otherwise
        return jnp.dot(v.astype(jnp.bfloat16), w_ref[i, :k, :],
                       preferred_element_type=jnp.float32) + b_ref[i]

    # h1 + ReLU (input normalization is folded into the packed W1/b1)
    a = jnp.maximum(dot(x_ref[...])[:, :hidden], 0.0)

    # ResNet blocks.  The skip projection is fused into the first inner
    # matmul: columns [0:hidden] = inner layer 0, [hidden:2*hidden] = skip.
    for _ in range(num_blocks):
        z = dot(a)
        if num_block_layers > 1:
            y = jnp.maximum(z[:, :hidden], 0.0)
            for l in range(1, num_block_layers):
                y = dot(y)[:, :hidden]
                if l < num_block_layers - 1:
                    y = jnp.maximum(y, 0.0)
        else:
            y = z[:, :hidden]
        if use_skip:
            y = y + z[:, hidden:2 * hidden]
        a = jnp.maximum(y, 0.0)                       # outer ReLU from forward()

    # h2 + sigmoid, stored lane-dense (N padded to 128; sliced in wrapper)
    out_ref[...] = jax.nn.sigmoid(dot(a)).astype(out_ref.dtype)


def mlp_forward(x, w_slab, b_slab):
    batch, n_params = x.shape
    assert batch % TILE_M == 0
    n_mats = w_slab.shape[0]

    kernel = functools.partial(
        _mlp_kernel,
        num_blocks=NUM_MLP_BLOCKS,
        num_block_layers=NUM_BLOCK_LAYERS,
        use_skip=USE_SKIP,
        hidden=MLP_DIMS[0],
    )

    out_pad = pl.pallas_call(
        kernel,
        out_shape=jax.ShapeDtypeStruct((batch, N_PAD), jnp.float32),
        grid_spec=pltpu.PrefetchScalarGridSpec(
            num_scalar_prefetch=0,
            grid=(batch // TILE_M,),
            in_specs=[
                # x: last block dim equals the full array dim (8), so allowed
                pl.BlockSpec((TILE_M, n_params), lambda i: (i, 0)),
                # constant blocks: DMA'd once, VMEM-resident across grid steps
                pl.BlockSpec((n_mats, K_PAD, N_PAD), lambda i: (0, 0, 0)),
                pl.BlockSpec((n_mats, N_PAD), lambda i: (0, 0)),
            ],
            out_specs=pl.BlockSpec((TILE_M, N_PAD), lambda i: (i, 0)),
        ),
        compiler_params=pltpu.CompilerParams(
            dimension_semantics=("parallel",)),
    )(x, w_slab, b_slab)
    return out_pad[:, :OUTPUT_DIM]


# ----------------------------- parameter construction -----------------------
def make_linears(key):
    """Original (unfused) list of (W:(in,out), b:(out,)) in module order."""
    linears = []

    def add(key, d_in, d_out):
        k_w, k_b, key = jax.random.split(key, 3)
        scale = 1.0 / jnp.sqrt(jnp.float32(d_in))
        w = jax.random.uniform(k_w, (d_in, d_out), jnp.float32, -scale, scale)
        b = jax.random.uniform(k_b, (d_out,), jnp.float32, -scale, scale)
        linears.append((w, b))
        return key

    key = add(key, NUM_PARAMS, MLP_DIMS[0])                      # h1
    for i in range(NUM_MLP_BLOCKS):
        d_in, d_out = MLP_DIMS[i], MLP_DIMS[i + 1]
        for l in range(NUM_BLOCK_LAYERS):
            key = add(key, d_in if l == 0 else d_out, d_out)     # inner layers
        if USE_SKIP:
            key = add(key, d_in, d_out)                          # skip
    key = add(key, MLP_DIMS[-1], OUTPUT_DIM)                     # h2
    return linears


def pack_params(linears, lo, inv_range):
    """Pack all linears into one (n_mats, K_PAD, N_PAD) bf16 weight slab and
    one (n_mats, N_PAD) f32 bias slab.

    * The input normalization (x - lo) * inv_range is folded into h1:
        W1' = diag(inv_range) @ W1,  b1' = b1 - (lo * inv_range) @ W1
    * The skip projection of each ResNet block is concatenated along the
      output axis with the block's first inner linear so both are computed
      by a single MXU dot."""
    w1, b1 = linears[0]
    w1f = inv_range[:, None] * w1
    b1f = b1 - (lo * inv_range) @ w1
    linears = [(w1f, b1f)] + list(linears[1:])

    mats = []
    idx = 0

    def padded(w, b, w2=None, b2=None):
        wp = jnp.zeros((K_PAD, N_PAD), jnp.float32)
        bp = jnp.zeros((N_PAD,), jnp.float32)
        wp = wp.at[: w.shape[0], : w.shape[1]].set(w)
        bp = bp.at[: b.shape[0]].set(b)
        if w2 is not None:
            o = w.shape[1]
            wp = wp.at[: w2.shape[0], o:o + w2.shape[1]].set(w2)
            bp = bp.at[o:o + b2.shape[0]].set(b2)
        return wp, bp

    w, b = linears[idx]; idx += 1
    mats.append(padded(w, b))                                    # h1 (fused norm)
    for _ in range(NUM_MLP_BLOCKS):
        inner = [linears[idx + l] for l in range(NUM_BLOCK_LAYERS)]
        idx += NUM_BLOCK_LAYERS
        if USE_SKIP:
            w_skip, b_skip = linears[idx]; idx += 1
            mats.append(padded(inner[0][0], inner[0][1], w_skip, b_skip))
        else:
            mats.append(padded(*inner[0]))
        for l in range(1, NUM_BLOCK_LAYERS):
            mats.append(padded(*inner[l]))
    w, b = linears[idx]; idx += 1
    mats.append(padded(w, b))                                    # h2

    w_slab = jnp.stack([m[0] for m in mats]).astype(jnp.bfloat16)
    b_slab = jnp.stack([m[1] for m in mats])                     # f32 biases
    return w_slab, b_slab


# ----------------------------- pure-JAX reference ----------------------------
def ref_forward(x, lo, hi, linears):
    idx = [0]

    def linear(h):
        w, b = linears[idx[0]]
        idx[0] += 1
        return h @ w + b

    h = (x - lo) / (hi - lo)
    h = jnp.maximum(linear(h), 0.0)
    for _ in range(NUM_MLP_BLOCKS):
        y = h
        for l in range(NUM_BLOCK_LAYERS):
            y = linear(y)
            if l < NUM_BLOCK_LAYERS - 1:
                y = jnp.maximum(y, 0.0)
        if USE_SKIP:
            y = y + linear(h)
        h = jnp.maximum(y, 0.0)
    return jax.nn.sigmoid(linear(h))


# ----------------------------- main ------------------------------------------
if __name__ == "__main__":
    key = jax.random.PRNGKey(0)
    k_x, k_p = jax.random.split(key)

    # parameter bounds: lower / upper per input parameter (synthetic stand-in
    # for the cosmo config file the PyTorch module loads)
    lo = jnp.arange(NUM_PARAMS, dtype=jnp.float32) * 0.1 - 1.0
    hi = lo + 2.0
    inv_range = 1.0 / (hi - lo)

    # batched cosmological + bias parameter vectors
    x = jax.random.uniform(k_x, (BATCH, NUM_PARAMS), jnp.float32, -0.5, 0.5)

    linears = make_linears(k_p)
    w_slab, b_slab = pack_params(linears, lo, inv_range)

    out = mlp_forward(x, w_slab, b_slab)
    out = jax.block_until_ready(out)

    expected = ref_forward(x, lo, hi, linears)
    assert out.shape == (BATCH, OUTPUT_DIM)
    err = float(jnp.max(jnp.abs(out - expected)))
    # bf16 matmul operands (f32 accumulation) vs. an all-f32 reference:
    # tolerance loosened per review (test artifact, not a kernel bug).
    assert err < 2e-2, err
    print("KERNEL_OK")
</pallas_src>

<mosaic_0001>
module attributes {stable_mosaic.version = 11 : i64} {
  func.func @_mlp_kernel(%arg0: i32, %arg1: memref<256x8xf32, #tpu.memory_space<vmem>>, %arg2: memref<6x32x128xbf16, #tpu.memory_space<vmem>>, %arg3: memref<6x128xf32, #tpu.memory_space<vmem>>, %arg4: memref<256x128xf32, #tpu.memory_space<vmem>>) attributes {dimension_semantics = [#tpu.dimension_semantics<parallel>], iteration_bounds = array<i64: 2>, scalar_prefetch = 0 : i64, scratch_operands = 0 : i64, tpu.core_type = #tpu.core_type<tc>, window_params = [{transform_indices = @transform_0, window_bounds = array<i64: 256, 8>}, {pipeline_mode = #tpu.pipeline_mode<synchronous>, transform_indices = @transform_1, window_bounds = array<i64: 6, 32, 128>}, {pipeline_mode = #tpu.pipeline_mode<synchronous>, transform_indices = @transform_2, window_bounds = array<i64: 6, 128>}, {transform_indices = @transform_3, window_bounds = array<i64: 256, 128>}]} {
    %c0 = arith.constant 0 : index
    %c0_0 = arith.constant 0 : index
    %0 = vector.load %arg1[%c0, %c0_0] : memref<256x8xf32, #tpu.memory_space<vmem>>, vector<256x8xf32>
    %1 = arith.truncf %0 : vector<256x8xf32> to vector<256x8xbf16>
    %c0_1 = arith.constant 0 : index
    %c0_2 = arith.constant 0 : index
    %c0_3 = arith.constant 0 : index
    %2 = vector.load %arg2[%c0_1, %c0_2, %c0_3] : memref<6x32x128xbf16, #tpu.memory_space<vmem>>, vector<1x8x128xbf16>
    %3 = vector.shape_cast %2 : vector<1x8x128xbf16> to vector<8x128xbf16>
    %cst = arith.constant dense<0.000000e+00> : vector<256x128xf32>
    %4 = tpu.matmul %1, %3, %cst {dimension_numbers = #tpu.dot_dimension_numbers<[1], [0], [0], [1], [0, 0, 1, 1], [], []>} : vector<256x8xbf16>, vector<8x128xbf16>, vector<256x128xf32> -> vector<256x128xf32>
    %c0_4 = arith.constant 0 : index
    %c0_5 = arith.constant 0 : index
    %5 = vector.load %arg3[%c0_4, %c0_5] : memref<6x128xf32, #tpu.memory_space<vmem>>, vector<1x128xf32>
    %6 = vector.shape_cast %5 : vector<1x128xf32> to vector<128xf32>
    %7 = vector.shape_cast %6 : vector<128xf32> to vector<1x128xf32>
    %8 = vector.broadcast %7 : vector<1x128xf32> to vector<256x128xf32>
    %9 = arith.addf %4, %8 : vector<256x128xf32>
    %10 = vector.extract_strided_slice %9 {offsets = [0, 0], sizes = [256, 32], strides = [1, 1]} : vector<256x128xf32> to vector<256x32xf32>
    %cst_6 = arith.constant 0.000000e+00 : f32
    %11 = vector.broadcast %cst_6 : f32 to vector<256x32xf32>
    %12 = arith.maximumf %10, %11 : vector<256x32xf32>
    %13 = arith.truncf %12 : vector<256x32xf32> to vector<256x32xbf16>
    %c1 = arith.constant 1 : index
    %c0_7 = arith.constant 0 : index
    %c0_8 = arith.constant 0 : index
    %14 = vector.load %arg2[%c1, %c0_7, %c0_8] : memref<6x32x128xbf16, #tpu.memory_space<vmem>>, vector<1x32x128xbf16>
    %15 = vector.shape_cast %14 : vector<1x32x128xbf16> to vector<32x128xbf16>
    %cst_9 = arith.constant dense<0.000000e+00> : vector<256x128xf32>
    %16 = tpu.matmul %13, %15, %cst_9 {dimension_numbers = #tpu.dot_dimension_numbers<[1], [0], [0], [1], [0, 0, 1, 1], [], []>} : vector<256x32xbf16>, vector<32x128xbf16>, vector<256x128xf32> -> vector<256x128xf32>
    %c1_10 = arith.constant 1 : index
    %c0_11 = arith.constant 0 : index
    %17 = vector.load %arg3[%c1_10, %c0_11] : memref<6x128xf32, #tpu.memory_space<vmem>>, vector<1x128xf32>
    %18 = vector.shape_cast %17 : vector<1x128xf32> to vector<128xf32>
    %19 = vector.shape_cast %18 : vector<128xf32> to vector<1x128xf32>
    %20 = vector.broadcast %19 : vector<1x128xf32> to vector<256x128xf32>
    %21 = arith.addf %16, %20 : vector<256x128xf32>
    %22 = vector.extract_strided_slice %21 {offsets = [0, 0], sizes = [256, 32], strides = [1, 1]} : vector<256x128xf32> to vector<256x32xf32>
    %cst_12 = arith.constant 0.000000e+00 : f32
    %23 = vector.broadcast %cst_12 : f32 to vector<256x32xf32>
    %24 = arith.maximumf %22, %23 : vector<256x32xf32>
    %25 = arith.truncf %24 : vector<256x32xf32> to vector<256x32xbf16>
    %c2 = arith.constant 2 : index
    %c0_13 = arith.constant 0 : index
    %c0_14 = arith.constant 0 : index
    %26 = vector.load %arg2[%c2, %c0_13, %c0_14] : memref<6x32x128xbf16, #tpu.memory_space<vmem>>, vector<1x32x128xbf16>
    %27 = vector.shape_cast %26 : vector<1x32x128xbf16> to vector<32x128xbf16>
    %cst_15 = arith.constant dense<0.000000e+00> : vector<256x128xf32>
    %28 = tpu.matmul %25, %27, %cst_15 {dimension_numbers = #tpu.dot_dimension_numbers<[1], [0], [0], [1], [0, 0, 1, 1], [], []>} : vector<256x32xbf16>, vector<32x128xbf16>, vector<256x128xf32> -> vector<256x128xf32>
    %c2_16 = arith.constant 2 : index
    %c0_17 = arith.constant 0 : index
    %29 = vector.load %arg3[%c2_16, %c0_17] : memref<6x128xf32, #tpu.memory_space<vmem>>, vector<1x128xf32>
    %30 = vector.shape_cast %29 : vector<1x128xf32> to vector<128xf32>
    %31 = vector.shape_cast %30 : vector<128xf32> to vector<1x128xf32>
    %32 = vector.broadcast %31 : vector<1x128xf32> to vector<256x128xf32>
    %33 = arith.addf %28, %32 : vector<256x128xf32>
    %34 = vector.extract_strided_slice %33 {offsets = [0, 0], sizes = [256, 32], strides = [1, 1]} : vector<256x128xf32> to vector<256x32xf32>
    %35 = vector.extract_strided_slice %21 {offsets = [0, 32], sizes = [256, 32], strides = [1, 1]} : vector<256x128xf32> to vector<256x32xf32>
    %36 = arith.addf %34, %35 : vector<256x32xf32>
    %cst_18 = arith.constant 0.000000e+00 : f32
    %37 = vector.broadcast %cst_18 : f32 to vector<256x32xf32>
    %38 = arith.maximumf %36, %37 : vector<256x32xf32>
    %39 = arith.truncf %38 : vector<256x32xf32> to vector<256x32xbf16>
    %c3 = arith.constant 3 : index
    %c0_19 = arith.constant 0 : index
    %c0_20 = arith.constant 0 : index
    %40 = vector.load %arg2[%c3, %c0_19, %c0_20] : memref<6x32x128xbf16, #tpu.memory_space<vmem>>, vector<1x32x128xbf16>
    %41 = vector.shape_cast %40 : vector<1x32x128xbf16> to vector<32x128xbf16>
    %cst_21 = arith.constant dense<0.000000e+00> : vector<256x128xf32>
    %42 = tpu.matmul %39, %41, %cst_21 {dimension_numbers = #tpu.dot_dimension_numbers<[1], [0], [0], [1], [0, 0, 1, 1], [], []>} : vector<256x32xbf16>, vector<32x128xbf16>, vector<256x128xf32> -> vector<256x128xf32>
    %c3_22 = arith.constant 3 : index
    %c0_23 = arith.constant 0 : index
    %43 = vector.load %arg3[%c3_22, %c0_23] : memref<6x128xf32, #tpu.memory_space<vmem>>, vector<1x128xf32>
    %44 = vector.shape_cast %43 : vector<1x128xf32> to vector<128xf32>
    %45 = vector.shape_cast %44 : vector<128xf32> to vector<1x128xf32>
    %46 = vector.broadcast %45 : vector<1x128xf32> to vector<256x128xf32>
    %47 = arith.addf %42, %46 : vector<256x128xf32>
    %48 = vector.extract_strided_slice %47 {offsets = [0, 0], sizes = [256, 32], strides = [1, 1]} : vector<256x128xf32> to vector<256x32xf32>
    %cst_24 = arith.constant 0.000000e+00 : f32
    %49 = vector.broadcast %cst_24 : f32 to vector<256x32xf32>
    %50 = arith.maximumf %48, %49 : vector<256x32xf32>
    %51 = arith.truncf %50 : vector<256x32xf32> to vector<256x32xbf16>
    %c4 = arith.constant 4 : index
    %c0_25 = arith.constant 0 : index
    %c0_26 = arith.constant 0 : index
    %52 = vector.load %arg2[%c4, %c0_25, %c0_26] : memref<6x32x128xbf16, #tpu.memory_space<vmem>>, vector<1x32x128xbf16>
    %53 = vector.shape_cast %52 : vector<1x32x128xbf16> to vector<32x128xbf16>
    %cst_27 = arith.constant dense<0.000000e+00> : vector<256x128xf32>
    %54 = tpu.matmul %51, %53, %cst_27 {dimension_numbers = #tpu.dot_dimension_numbers<[1], [0], [0], [1], [0, 0, 1, 1], [], []>} : vector<256x32xbf16>, vector<32x128xbf16>, vector<256x128xf32> -> vector<256x128xf32>
    %c4_28 = arith.constant 4 : index
    %c0_29 = arith.constant 0 : index
    %55 = vector.load %arg3[%c4_28, %c0_29] : memref<6x128xf32, #tpu.memory_space<vmem>>, vector<1x128xf32>
    %56 = vector.shape_cast %55 : vector<1x128xf32> to vector<128xf32>
    %57 = vector.shape_cast %56 : vector<128xf32> to vector<1x128xf32>
    %58 = vector.broadcast %57 : vector<1x128xf32> to vector<256x128xf32>
    %59 = arith.addf %54, %58 : vector<256x128xf32>
    %60 = vector.extract_strided_slice %59 {offsets = [0, 0], sizes = [256, 32], strides = [1, 1]} : vector<256x128xf32> to vector<256x32xf32>
    %61 = vector.extract_strided_slice %47 {offsets = [0, 32], sizes = [256, 32], strides = [1, 1]} : vector<256x128xf32> to vector<256x32xf32>
    %62 = arith.addf %60, %61 : vector<256x32xf32>
    %cst_30 = arith.constant 0.000000e+00 : f32
    %63 = vector.broadcast %cst_30 : f32 to vector<256x32xf32>
    %64 = arith.maximumf %62, %63 : vector<256x32xf32>
    %65 = arith.truncf %64 : vector<256x32xf32> to vector<256x32xbf16>
    %c5 = arith.constant 5 : index
    %c0_31 = arith.constant 0 : index
    %c0_32 = arith.constant 0 : index
    %66 = vector.load %arg2[%c5, %c0_31, %c0_32] : memref<6x32x128xbf16, #tpu.memory_space<vmem>>, vector<1x32x128xbf16>
    %67 = vector.shape_cast %66 : vector<1x32x128xbf16> to vector<32x128xbf16>
    %cst_33 = arith.constant dense<0.000000e+00> : vector<256x128xf32>
    %68 = tpu.matmul %65, %67, %cst_33 {dimension_numbers = #tpu.dot_dimension_numbers<[1], [0], [0], [1], [0, 0, 1, 1], [], []>} : vector<256x32xbf16>, vector<32x128xbf16>, vector<256x128xf32> -> vector<256x128xf32>
    %c5_34 = arith.constant 5 : index
    %c0_35 = arith.constant 0 : index
    %69 = vector.load %arg3[%c5_34, %c0_35] : memref<6x128xf32, #tpu.memory_space<vmem>>, vector<1x128xf32>
    %70 = vector.shape_cast %69 : vector<1x128xf32> to vector<128xf32>
    %71 = vector.shape_cast %70 : vector<128xf32> to vector<1x128xf32>
    %72 = vector.broadcast %71 : vector<1x128xf32> to vector<256x128xf32>
    %73 = arith.addf %68, %72 : vector<256x128xf32>
    %74 = arith.negf %73 : vector<256x128xf32>
    %75 = math.exp %74 : vector<256x128xf32>
    %cst_36 = arith.constant 1.000000e+00 : f32
    %76 = vector.broadcast %cst_36 : f32 to vector<256x128xf32>
    %77 = arith.addf %76, %75 : vector<256x128xf32>
    %78 = arith.divf %76, %77 : vector<256x128xf32>
    %c0_37 = arith.constant 0 : index
    %c0_38 = arith.constant 0 : index
    %79 = vector.load %arg4[%c0_37, %c0_38] : memref<256x128xf32, #tpu.memory_space<vmem>>, vector<256x128xf32>
    tpu.vector_store %arg4[%c0_37, %c0_38], %78 {strides = array<i32>} : memref<256x128xf32, #tpu.memory_space<vmem>>, vector<256x128xf32>,
    return
  }
  func.func @transform_0(%arg0: i32) -> (i32, i32) {
    %c0_i32 = arith.constant 0 : i32
    %c0_i32_0 = arith.constant 0 : i32
    return %arg0, %c0_i32 : i32, i32
  }
  func.func @transform_1(%arg0: i32) -> (i32, i32, i32) {
    %c0_i32 = arith.constant 0 : i32
    %c0_i32_0 = arith.constant 0 : i32
    %c0_i32_1 = arith.constant 0 : i32
    %c0_i32_2 = arith.constant 0 : i32
    return %c0_i32, %c0_i32_0, %c0_i32_1 : i32, i32, i32
  }
  func.func @transform_2(%arg0: i32) -> (i32, i32) {
    %c0_i32 = arith.constant 0 : i32
    %c0_i32_0 = arith.constant 0 : i32
    %c0_i32_1 = arith.constant 0 : i32
    return %c0_i32, %c0_i32_0 : i32, i32
  }
  func.func @transform_3(%arg0: i32) -> (i32, i32) {
    %c0_i32 = arith.constant 0 : i32
    %c0_i32_0 = arith.constant 0 : i32
    return %arg0, %c0_i32 : i32, i32
  }
}

</mosaic_0001>

<llo_original>
// kernel: tpu_custom_call.1
$region0: #{tpu_custom_call.1}
  #allocation0 [shape = 'u32[]', space=smem, size = 0x4, offset = 0x4, fixed_abs, tag = 'smem constant byte address 0x4 - core index']
  #allocation1 [shape = 'u32[144,128]{1,0:T(1,128)}', space=vmem, size = 0x12000, scoped, tag = 'internal scratch']
  %s0 = inlined_call_operand.vmem [shape: f32[512,8], index: 0, kind: input, shape index: {}]
  %s1 = inlined_call_operand.vmem [shape: bf16[6,32,128], index: 1, kind: input, shape index: {}]
  %s2 = inlined_call_operand.vmem [shape: f32[6,128], index: 2, kind: input, shape index: {}]
  %s3 = inlined_call_operand.hbm [shape: f32[512,128], index: 3, kind: output, shape index: {}]
  %s4 = sld [smem:[#allocation0]]
  $region45: #{tpu_custom_call.1} parent=0
    _
  %s6 = ssub.s32 1, %s4
  %s7 = scalar_select 0, %s6, %s4
  $region1: #{tpu_custom_call.1} parent=0
    #allocation2 [shape = 'u8[262144]{0}', space=vmem, size = 0x40000, scoped, tag = 'output window, operand 0']
    #allocation3 [shape = 's32[2]{0}', space=sflag, size = 0x8, scoped, tag = 'scoped memory for tpu_custom_call.1']
    %8 = vsyncpa [#allocation3], 0
    %s9 = scalar_lea.sflag [#allocation3], 1
    %10 = vsyncpa %s9, 0
    loop: start=0, step=1, limit=4
    $region2: #{tpu_custom_call.1} parent=1 // loop_pre_header
      _
    $region3: #{tpu_custom_call.1} parent=1 // loop_header
      %s12 = sphi 0, %s16
      %p13 = scmp.ge.s32.totalorder %s12, 4
      %s22 = sphi 0, %s24
      %s25 = sphi 0, %s22
      %s26 = sphi 0, %s25
      %s42 = sphi 0, %s26
      %s46 = sphi 0, %s46
      %s48 = sphi 0, %s46
      %s49 = sphi 0, %s48
      %s63 = sphi 0, %s49
      %s67 = sphi 0, %s67
      %s69 = sphi 0, %s67
      %s70 = sphi 0, %s69
      %s84 = sphi 0, %s70
      %s90 = sphi 0, %s92
      %s93 = sphi 0, %s90
      %s94 = sphi 0, %s93
      %s110 = sphi 0, %s94
    $region4: #{tpu_custom_call.1} parent=1 // loop_header_branch
      %15 = sbr.rel (%p13) target = $region8
    $region5: #{tpu_custom_call.1} parent=1 // loop_body
      %s17 = ssub.s32 %s12, 1
      %s18 = ssub.s32 %s12, 2
      %s19 = sadd.s32 %s12, 1
      %s20 = ssub.s32 %s12, %s19
      %p21 = scmp.eq.s32.totalorder %s20, 0
      %s23 = sadd.s32 %s22, 1
      %s24 = scalar_select %p21, %s22, %s23
      %p27 = pneg %p21
      %p28 = scmp.eq.s32.totalorder %s12, 1
      %p29 = por %p27, %p28
      %p30 = scmp.ne.s32.totalorder %s22, %s25
      %p31 = scmp.eq.s32.totalorder %s12, 0
      %p32 = por %p30, %p31
      %p33 = scmp.ne.s32.totalorder %s22, %s25
      %p34 = scmp.eq.s32.totalorder %s17, 1
      %p35 = por %p33, %p34
      %p36 = scmp.ne.s32.totalorder %s25, %s26
      %p37 = scmp.eq.s32.totalorder %s17, 0
      %p38 = por %p36, %p37
      %p39 = scmp.ne.s32.totalorder %s25, %s26
      %p40 = scmp.eq.s32.totalorder %s18, 1
      %p41 = por %p39, %p40
      %p43 = scmp.ne.s32.totalorder %s26, %s42
      %p44 = scmp.eq.s32.totalorder %s18, 0
      %p45 = por %p43, %p44
      %s47 = sadd.s32 %s46, 1
      %p50 = scmp.eq.s32.totalorder %s12, 1
      %p51 = scmp.ne.s32.totalorder %s46, %s48
      %p52 = scmp.eq.s32.totalorder %s12, 0
      %p53 = por %p51, %p52
      %p54 = scmp.ne.s32.totalorder %s46, %s48
      %p55 = scmp.eq.s32.totalorder %s17, 1
      %p56 = por %p54, %p55
      %p57 = scmp.ne.s32.totalorder %s48, %s49
      %p58 = scmp.eq.s32.totalorder %s17, 0
      %p59 = por %p57, %p58
      %p60 = scmp.ne.s32.totalorder %s48, %s49
      %p61 = scmp.eq.s32.totalorder %s18, 1
      %p62 = por %p60, %p61
      %p64 = scmp.ne.s32.totalorder %s49, %s63
      %p65 = scmp.eq.s32.totalorder %s18, 0
      %p66 = por %p64, %p65
      %s68 = sadd.s32 %s67, 1
      %p71 = scmp.eq.s32.totalorder %s12, 1
      %p72 = scmp.ne.s32.totalorder %s67, %s69
      %p73 = scmp.eq.s32.totalorder %s12, 0
      %p74 = por %p72, %p73
      %p75 = scmp.ne.s32.totalorder %s67, %s69
      %p76 = scmp.eq.s32.totalorder %s17, 1
      %p77 = por %p75, %p76
      %p78 = scmp.ne.s32.totalorder %s69, %s70
      %p79 = scmp.eq.s32.totalorder %s17, 0
      %p80 = por %p78, %p79
      %p81 = scmp.ne.s32.totalorder %s69, %s70
      %p82 = scmp.eq.s32.totalorder %s18, 1
      %p83 = por %p81, %p82
      %p85 = scmp.ne.s32.totalorder %s70, %s84
      %p86 = scmp.eq.s32.totalorder %s18, 0
      %p87 = por %p85, %p86
      %s88 = ssub.s32 %s12, %s19
      %p89 = scmp.eq.s32.totalorder %s88, 0
      %s91 = sadd.s32 %s90, 1
      %s92 = scalar_select %p89, %s90, %s91
      %p95 = pneg %p89
      %p96 = scmp.eq.s32.totalorder %s12, 1
      %p97 = por %p95, %p96
      %p98 = scmp.ne.s32.totalorder %s90, %s93
      %p99 = scmp.eq.s32.totalorder %s12, 0
      %p100 = por %p98, %p99
      %p101 = scmp.ne.s32.totalorder %s90, %s93
      %p102 = scmp.eq.s32.totalorder %s17, 1
      %p103 = por %p101, %p102
      %p104 = scmp.ne.s32.totalorder %s93, %s94
      %p105 = scmp.eq.s32.totalorder %s17, 0
      %p106 = por %p104, %p105
      %p107 = scmp.ne.s32.totalorder %s93, %s94
      %p108 = scmp.eq.s32.totalorder %s18, 1
      %p109 = por %p107, %p108
      %p111 = scmp.ne.s32.totalorder %s94, %s110
      %p112 = scmp.eq.s32.totalorder %s18, 0
      %p113 = por %p111, %p112
      %p114 = scmp.le.s32.totalorder 1, %s12
      %p115 = scmp.lt.s32.totalorder %s12, 3
      %p116 = pnand %p114, %p115
      %p117 = pneg %p116
      // Predicated region
      $region9: #{tpu_custom_call.1} parent=5 // pred_check
        _
      $region10: #{tpu_custom_call.1} parent=5 // pred_check_branch
        %119 = sbr.rel (%p116) target = $region12
      $region11: #{tpu_custom_call.1} parent=5 // pred_region
        %s120 = ssub.s32 %s12, 1
        // Predicated region
        $region13: #{tpu_custom_call.1} parent=11 // pred_check
          %p121 = pneg %p59
        $region14: #{tpu_custom_call.1} parent=11 // pred_check_branch
          %123 = sbr.rel (%p121) target = $region16
        $region15: #{tpu_custom_call.1} parent=11 // pred_region
          _
        $region16: #{tpu_custom_call.1} parent=11 // pred_fallthru
          _
        // Predicated region
        $region17: #{tpu_custom_call.1} parent=11 // pred_check
          %p124 = pneg %p80
        $region18: #{tpu_custom_call.1} parent=11 // pred_check_branch
          %126 = sbr.rel (%p124) target = $region20
        $region19: #{tpu_custom_call.1} parent=11 // pred_region
          _
        $region20: #{tpu_custom_call.1} parent=11 // pred_fallthru
          _
      $region12: #{tpu_custom_call.1} parent=5 // pred_fallthru
        _
      %p127 = scmp.lt.s32.totalorder %s12, 2
      // Predicated region
      $region21: #{tpu_custom_call.1} parent=5 // pred_check
        %p128 = pneg %p127
      $region22: #{tpu_custom_call.1} parent=5 // pred_check_branch
        %130 = sbr.rel (%p128) target = $region24
      $region23: #{tpu_custom_call.1} parent=5 // pred_region
        // Predicated region
        $region25: #{tpu_custom_call.1} parent=23 // pred_check
          %p131 = pneg %p32
        $region26: #{tpu_custom_call.1} parent=23 // pred_check_branch
          %133 = sbr.rel (%p131) target = $region28
        $region27: #{tpu_custom_call.1} parent=23 // pred_region
          %s134 = smul.u32 32, %s12
          %p135 = scmp.lt.s32.totalorder %s134, 63
          %s136 = scalar_select %p135, %s134, 63
          %s137 = smul.addr %s136, 8
          %s138 = scalar_lea.vmem %s0, %s137
          %s139 = smul.u32 32, %s12
        $region28: #{tpu_custom_call.1} parent=23 // pred_fallthru
          _
      $region24: #{tpu_custom_call.1} parent=5 // pred_fallthru
        _
      %p140 = scmp.le.s32.totalorder 1, %s12
      %p141 = scmp.lt.s32.totalorder %s12, 3
      %p142 = pnand %p140, %p141
      %p143 = pneg %p142
      // Predicated region
      $region29: #{tpu_custom_call.1} parent=5 // pred_check
        _
      $region30: #{tpu_custom_call.1} parent=5 // pred_check_branch
        %145 = sbr.rel (%p142) target = $region32
      $region31: #{tpu_custom_call.1} parent=5 // pred_region
        %s146 = ssub.s32 %s12, 1
        %s147 = smul.u32 32, %s17
        %p148 = scmp.lt.s32.totalorder %s147, 63
        %s149 = scalar_select %p148, %s147, 63
        %s150 = smul.addr %s149, 8
        %s151 = scalar_lea.vmem %s0, %s150
        %p152 = pneg %p38
        %p153 = pneg %p35
        %p154 = pneg %p59
        %p155 = pneg %p56
        %p156 = pneg %p80
        %p157 = pneg %p77
        %p158 = pneg %p106
        %p159 = pneg %p103
        %s160 = sand.u32 %s93, 1
        %s161 = scalar_lea.sflag [#allocation3], %s160
        %s162 = sand.u32 %s93, 1
        %s163 = smul.addr %s162, 256
        %s164 = scalar_lea.vmem [#allocation2], %s163
        %s165 = smul.u32 32, %s17
        %p166 = scmp.lt.s32.totalorder %s165, 63
        %s167 = scalar_select %p166, %s165, 63
        %s168 = smul.addr %s167, 8
        %s169 = scalar_lea.vmem %s0, %s168
        %s170 = smul.u32 32, %s17
        %s171 = smul.u32 32, %s17
        %v173 = vld [vmem:[%s169] sm:$0xff]
        %v174 = vld [vmem:[%s169 + $0x8] sm:$0xff]
        %v175 = vld [vmem:[%s169 + $0x10] sm:$0xff]
        %v176 = vld [vmem:[%s169 + $0x18] sm:$0xff]
        %v177 = vld [vmem:[%s169 + $0x20] sm:$0xff]
        %v178 = vld [vmem:[%s169 + $0x28] sm:$0xff]
        %v179 = vld [vmem:[%s169 + $0x30] sm:$0xff]
        %v180 = vld [vmem:[%s169 + $0x38] sm:$0xff]
        %v181 = vld [vmem:[%s169 + $0x40] sm:$0xff]
        %v182 = vld [vmem:[%s169 + $0x48] sm:$0xff]
        %v183 = vld [vmem:[%s169 + $0x50] sm:$0xff]
        %v184 = vld [vmem:[%s169 + $0x58] sm:$0xff]
        %v185 = vld [vmem:[%s169 + $0x60] sm:$0xff]
        %v186 = vld [vmem:[%s169 + $0x68] sm:$0xff]
        %v187 = vld [vmem:[%s169 + $0x70] sm:$0xff]
        %v188 = vld [vmem:[%s169 + $0x78] sm:$0xff]
        %v189 = vld [vmem:[%s169 + $0x80] sm:$0xff]
        %v190 = vld [vmem:[%s169 + $0x88] sm:$0xff]
        %v191 = vld [vmem:[%s169 + $0x90] sm:$0xff]
        %v192 = vld [vmem:[%s169 + $0x98] sm:$0xff]
        %v193 = vld [vmem:[%s169 + $0xa0] sm:$0xff]
        %v194 = vld [vmem:[%s169 + $0xa8] sm:$0xff]
        %v195 = vld [vmem:[%s169 + $0xb0] sm:$0xff]
        %v196 = vld [vmem:[%s169 + $0xb8] sm:$0xff]
        %v197 = vld [vmem:[%s169 + $0xc0] sm:$0xff]
        %v198 = vld [vmem:[%s169 + $0xc8] sm:$0xff]
        %v199 = vld [vmem:[%s169 + $0xd0] sm:$0xff]
        %v200 = vld [vmem:[%s169 + $0xd8] sm:$0xff]
        %v201 = vld [vmem:[%s169 + $0xe0] sm:$0xff]
        %v202 = vld [vmem:[%s169 + $0xe8] sm:$0xff]
        %v203 = vld [vmem:[%s169 + $0xf0] sm:$0xff]
        %v204 = vld [vmem:[%s169 + $0xf8] sm:$0xff]
        %v205 = vpack.c.bf16 %v174, %v173
        %v206 = vpack.c.bf16 %v176, %v175
        %v207 = vpack.c.bf16 %v178, %v177
        %v208 = vpack.c.bf16 %v180, %v179
        %v209 = vpack.c.bf16 %v182, %v181
        %v210 = vpack.c.bf16 %v184, %v183
        %v211 = vpack.c.bf16 %v186, %v185
        %v212 = vpack.c.bf16 %v188, %v187
        %v213 = vpack.c.bf16 %v190, %v189
        %v214 = vpack.c.bf16 %v192, %v191
        %v215 = vpack.c.bf16 %v194, %v193
        %v216 = vpack.c.bf16 %v196, %v195
        %v217 = vpack.c.bf16 %v198, %v197
        %v218 = vpack.c.bf16 %v200, %v199
        %v219 = vpack.c.bf16 %v202, %v201
        %v220 = vpack.c.bf16 %v204, %v203
        %v221 = vld [vmem:[%s1] sm:$0xf]
        %v222 = vld [vmem:[%s2] sm:$0x1]
        %v223 = vlaneseq
        %v224 = vshrl.u32 %v223, 7
        %v225 = vsub.s32 0, %v224
        %v226 = vrot.slane %v222, %v225
        %vm227 = vcmask 64512
        %v229 = vsel %vm227, %v205, 0
        %v232 = vsel %vm227, %v206, 0
        %v235 = vsel %vm227, %v207, 0
        %v238 = vsel %vm227, %v208, 0
        %v241 = vsel %vm227, %v209, 0
        %v244 = vsel %vm227, %v210, 0
        %v247 = vsel %vm227, %v211, 0
        %v250 = vsel %vm227, %v212, 0
        %v253 = vsel %vm227, %v213, 0
        %v256 = vsel %vm227, %v214, 0
        %v259 = vsel %vm227, %v215, 0
        %v262 = vsel %vm227, %v216, 0
        %v265 = vsel %vm227, %v217, 0
        %v268 = vsel %vm227, %v218, 0
        %v271 = vsel %vm227, %v219, 0
        %v274 = vsel %vm227, %v220, 0
        %vm276 = vcmask 1043456
        %v278 = vsel %vm276, %v221, 0
        %280 = vmatprep.subr.bf16.mxu0 0
        %281 = vmatpush1.bf16.msra.mxu0 0
        %282 = vmatprep.subr.bf16.mxu0 0
        %283 = vmatpush1.bf16.msra.mxu0 0
        %284 = vmatprep.subr.bf16.mxu0 0
        %285 = vmatpush1.bf16.msra.mxu0 0
        %286 = vmatprep.subr.bf16.mxu0 0
        %287 = vmatpush1.bf16.msra.mxu0 0
        %288 = vmatprep.subr.bf16.mxu0 0
        %289 = vmatpush1.bf16.msra.mxu0 0
        %290 = vmatprep.subr.bf16.mxu0 0
        %291 = vmatpush1.bf16.msra.mxu0 0
        %292 = vmatprep.subr.bf16.mxu0 0
        %293 = vmatpush1.bf16.msra.mxu0 0
        %294 = vmatprep.subr.bf16.mxu0 0
        %295 = vmatpush1.bf16.msra.mxu0 %v278
        %296 = vmatprep.subr.bf16.mxu0 0
        %297 = vmatpush2.bf16.msra.mxu0 0
        %298 = vmatprep.subr.bf16.mxu0 0
        %299 = vmatpush2.bf16.msra.mxu0 0
        %300 = vmatprep.subr.bf16.mxu0 0
        %301 = vmatpush2.bf16.msra.mxu0 0
        %302 = vmatprep.subr.bf16.mxu0 0
        %303 = vmatpush2.bf16.msra.mxu0 0
        %304 = vmatprep.subr.bf16.mxu0 0
        %305 = vmatpush2.bf16.msra.mxu0 0
        %306 = vmatprep.subr.bf16.mxu0 0
        %307 = vmatpush2.bf16.msra.mxu0 0
        %308 = vmatprep.subr.bf16.mxu0 0
        %309 = vmatpush2.bf16.msra.mxu0 0
        %310 = vmatprep.subr.bf16.mxu0 0
        %311 = vmatpush2.bf16.msra.mxu0 0
        %312 = vmatprep.mubr.bf16.mxu0 0
        %313 = vmatmul.mubr.bf16.gmra.mxu0 %v229
        %v314 = vpop.f32.mrf.mxu0
        %v315 = vadd.f32 %v226, %v314
        %v316 = vpop.f32.mrf.mxu0
        %v317 = vpop.f32.mrf.mxu0
        %v318 = vadd.f32 %v226, %v317
        %v319 = vpop.f32.mrf.mxu0
        %320 = vmatprep.mubr.bf16.mxu0 0
        %321 = vmatmul.mubr.bf16.gmra.mxu0 %v232
        %v322 = vpop.f32.mrf.mxu0
        %v323 = vadd.f32 %v226, %v322
        %v324 = vpop.f32.mrf.mxu0
        %v325 = vpop.f32.mrf.mxu0
        %v326 = vadd.f32 %v226, %v325
        %v327 = vpop.f32.mrf.mxu0
        %328 = vmatprep.mubr.bf16.mxu0 0
        %329 = vmatmul.mubr.bf16.gmra.mxu0 %v235
        %v330 = vpop.f32.mrf.mxu0
        %v331 = vadd.f32 %v226, %v330
        %v332 = vpop.f32.mrf.mxu0
        %v333 = vpop.f32.mrf.mxu0
        %v334 = vadd.f32 %v226, %v333
        %v335 = vpop.f32.mrf.mxu0
        %336 = vmatprep.mubr.bf16.mxu0 0
        %337 = vmatmul.mubr.bf16.gmra.mxu0 %v238
        %v338 = vpop.f32.mrf.mxu0
        %v339 = vadd.f32 %v226, %v338
        %v340 = vpop.f32.mrf.mxu0
        %v341 = vpop.f32.mrf.mxu0
        %v342 = vadd.f32 %v226, %v341
        %v343 = vpop.f32.mrf.mxu0
        %344 = vmatprep.mubr.bf16.mxu0 0
        %345 = vmatmul.mubr.bf16.gmra.mxu0 %v241
        %v346 = vpop.f32.mrf.mxu0
        %v347 = vadd.f32 %v226, %v346
        %v348 = vpop.f32.mrf.mxu0
        %v349 = vpop.f32.mrf.mxu0
        %v350 = vadd.f32 %v226, %v349
        %v351 = vpop.f32.mrf.mxu0
        %352 = vmatprep.mubr.bf16.mxu0 0
        %353 = vmatmul.mubr.bf16.gmra.mxu0 %v244
        %v354 = vpop.f32.mrf.mxu0
        %v355 = vadd.f32 %v226, %v354
        %v356 = vpop.f32.mrf.mxu0
        %v357 = vpop.f32.mrf.mxu0
        %v358 = vadd.f32 %v226, %v357
        %v359 = vpop.f32.mrf.mxu0
        %360 = vmatprep.mubr.bf16.mxu0 0
        %361 = vmatmul.mubr.bf16.gmra.mxu0 %v247
        %v362 = vpop.f32.mrf.mxu0
        %v363 = vadd.f32 %v226, %v362
        %v364 = vpop.f32.mrf.mxu0
        %v365 = vpop.f32.mrf.mxu0
        %v366 = vadd.f32 %v226, %v365
        %v367 = vpop.f32.mrf.mxu0
        %368 = vmatprep.mubr.bf16.mxu0 0
        %369 = vmatmul.mubr.bf16.gmra.mxu0 %v250
        %v370 = vpop.f32.mrf.mxu0
        %v371 = vadd.f32 %v226, %v370
        %v372 = vpop.f32.mrf.mxu0
        %v373 = vpop.f32.mrf.mxu0
        %v374 = vadd.f32 %v226, %v373
        %v375 = vpop.f32.mrf.mxu0
        %376 = vmatprep.mubr.bf16.mxu0 0
        %377 = vmatmul.mubr.bf16.gmra.mxu0 %v253
        %v378 = vpop.f32.mrf.mxu0
        %v379 = vadd.f32 %v226, %v378
        %v380 = vpop.f32.mrf.mxu0
        %v381 = vpop.f32.mrf.mxu0
        %v382 = vadd.f32 %v226, %v381
        %v383 = vpop.f32.mrf.mxu0
        %384 = vmatprep.mubr.bf16.mxu0 0
        %385 = vmatmul.mubr.bf16.gmra.mxu0 %v256
        %v386 = vpop.f32.mrf.mxu0
        %v387 = vadd.f32 %v226, %v386
        %v388 = vpop.f32.mrf.mxu0
        %v389 = vpop.f32.mrf.mxu0
        %v390 = vadd.f32 %v226, %v389
        %v391 = vpop.f32.mrf.mxu0
        %392 = vmatprep.mubr.bf16.mxu0 0
        %393 = vmatmul.mubr.bf16.gmra.mxu0 %v259
        %v394 = vpop.f32.mrf.mxu0
        %v395 = vadd.f32 %v226, %v394
        %v396 = vpop.f32.mrf.mxu0
        %v397 = vpop.f32.mrf.mxu0
        %v398 = vadd.f32 %v226, %v397
        %v399 = vpop.f32.mrf.mxu0
        %400 = vmatprep.mubr.bf16.mxu0 0
        %401 = vmatmul.mubr.bf16.gmra.mxu0 %v262
        %v402 = vpop.f32.mrf.mxu0
        %v403 = vadd.f32 %v226, %v402
        %v404 = vpop.f32.mrf.mxu0
        %v405 = vpop.f32.mrf.mxu0
        %v406 = vadd.f32 %v226, %v405
        %v407 = vpop.f32.mrf.mxu0
        %408 = vmatprep.mubr.bf16.mxu0 0
        %409 = vmatmul.mubr.bf16.gmra.mxu0 %v265
        %v410 = vpop.f32.mrf.mxu0
        %v411 = vadd.f32 %v226, %v410
        %v412 = vpop.f32.mrf.mxu0
        %v413 = vpop.f32.mrf.mxu0
        %v414 = vadd.f32 %v226, %v413
        %v415 = vpop.f32.mrf.mxu0
        %416 = vmatprep.mubr.bf16.mxu0 0
        %417 = vmatmul.mubr.bf16.gmra.mxu0 %v268
        %v418 = vpop.f32.mrf.mxu0
        %v419 = vadd.f32 %v226, %v418
        %v420 = vpop.f32.mrf.mxu0
        %v421 = vpop.f32.mrf.mxu0
        %v422 = vadd.f32 %v226, %v421
        %v423 = vpop.f32.mrf.mxu0
        %424 = vmatprep.mubr.bf16.mxu0 0
        %425 = vmatmul.mubr.bf16.gmra.mxu0 %v271
        %v426 = vpop.f32.mrf.mxu0
        %v427 = vadd.f32 %v226, %v426
        %v428 = vpop.f32.mrf.mxu0
        %v429 = vpop.f32.mrf.mxu0
        %v430 = vadd.f32 %v226, %v429
        %v431 = vpop.f32.mrf.mxu0
        %432 = vmatprep.mubr.bf16.mxu0 0
        %433 = vmatmul.mubr.bf16.gmra.mxu0 %v274
        %v434 = vpop.f32.mrf.mxu0
        %v435 = vadd.f32 %v226, %v434
        %v436 = vpop.f32.mrf.mxu0
        %v437 = vpop.f32.mrf.mxu0
        %v438 = vadd.f32 %v226, %v437
        %v439 = vpop.f32.mrf.mxu0
        %440 = vdwg.mxu0
        %v441 = vmax.f32 %v315, 0.0
        %v442 = vmax.f32 %v318, 0.0
        %v443 = vmax.f32 %v323, 0.0
        %v444 = vmax.f32 %v326, 0.0
        %v445 = vmax.f32 %v331, 0.0
        %v446 = vmax.f32 %v334, 0.0
        %v447 = vmax.f32 %v339, 0.0
        %v448 = vmax.f32 %v342, 0.0
        %v449 = vmax.f32 %v347, 0.0
        %v450 = vmax.f32 %v350, 0.0
        %v451 = vmax.f32 %v355, 0.0
        %v452 = vmax.f32 %v358, 0.0
        %v453 = vmax.f32 %v363, 0.0
        %v454 = vmax.f32 %v366, 0.0
        %v455 = vmax.f32 %v371, 0.0
        %v456 = vmax.f32 %v374, 0.0
        %v457 = vmax.f32 %v379, 0.0
        %v458 = vmax.f32 %v382, 0.0
        %v459 = vmax.f32 %v387, 0.0
        %v460 = vmax.f32 %v390, 0.0
        %v461 = vmax.f32 %v395, 0.0
        %v462 = vmax.f32 %v398, 0.0
        %v463 = vmax.f32 %v403, 0.0
        %v464 = vmax.f32 %v406, 0.0
        %v465 = vmax.f32 %v411, 0.0
        %v466 = vmax.f32 %v414, 0.0
        %v467 = vmax.f32 %v419, 0.0
        %v468 = vmax.f32 %v422, 0.0
        %v469 = vmax.f32 %v427, 0.0
        %v470 = vmax.f32 %v430, 0.0
        %v471 = vmax.f32 %v435, 0.0
        %v472 = vmax.f32 %v438, 0.0
        %v473 = vpack.c.bf16 %v442, %v441
        %v474 = vpack.c.bf16 %v444, %v443
        %v475 = vpack.c.bf16 %v446, %v445
        %v476 = vpack.c.bf16 %v448, %v447
        %v477 = vpack.c.bf16 %v450, %v449
        %v478 = vpack.c.bf16 %v452, %v451
        %v479 = vpack.c.bf16 %v454, %v453
        %v480 = vpack.c.bf16 %v456, %v455
        %v481 = vpack.c.bf16 %v458, %v457
        %v482 = vpack.c.bf16 %v460, %v459
        %v483 = vpack.c.bf16 %v462, %v461
        %v484 = vpack.c.bf16 %v464, %v463
        %v485 = vpack.c.bf16 %v466, %v465
        %v486 = vpack.c.bf16 %v468, %v467
        %v487 = vpack.c.bf16 %v470, %v469
        %v488 = vpack.c.bf16 %v472, %v471
        %s489 = scalar_lea.vmem %s1, 16
        %v490 = vld [vmem:[%s489] sm:$0xf]
        %v491 = vld [vmem:[%s489 + $0x4] sm:$0xf]
        %v492 = vld [vmem:[%s489 + $0x8] sm:$0xf]
        %v493 = vld [vmem:[%s489 + $0xc] sm:$0xf]
        %v494 = vld [vmem:[%s2 + $0x1] sm:$0x1]
        %v495 = vlaneseq
        %v496 = vshrl.u32 %v495, 7
        %v497 = vsub.s32 0, %v496
        %v498 = vrot.slane %v494, %v497
        %v503 = vunpack.c.l.b16 %v490
        %v504 = vunpack.c.l.b16 %v491
        %v505 = vunpack.c.l.b16 %v492
        %v506 = vunpack.c.l.b16 %v493
        %v507 = vpack.c.b16 %v504, %v503
        %v508 = vpack.c.b16 %v506, %v505
        %vm511 = vcmask 261120
        %v513 = vsel %vm511, %v473, 0
        %v516 = vsel %vm511, %v474, 0
        %v519 = vsel %vm511, %v475, 0
        %v522 = vsel %vm511, %v476, 0
        %v525 = vsel %vm511, %v477, 0
        %v528 = vsel %vm511, %v478, 0
        %v531 = vsel %vm511, %v479, 0
        %v534 = vsel %vm511, %v480, 0
        %v537 = vsel %vm511, %v481, 0
        %v540 = vsel %vm511, %v482, 0
        %v543 = vsel %vm511, %v483, 0
        %v546 = vsel %vm511, %v484, 0
        %v549 = vsel %vm511, %v485, 0
        %v552 = vsel %vm511, %v486, 0
        %v555 = vsel %vm511, %v487, 0
        %v558 = vsel %vm511, %v488, 0
        %560 = vmatprep.subr.bf16.mxu0 0
        %561 = vmatpush1.bf16.msra.mxu0 0
        %562 = vmatprep.subr.bf16.mxu0 0
        %563 = vmatpush1.bf16.msra.mxu0 0
        %564 = vmatprep.subr.bf16.mxu0 0
        %565 = vmatpush1.bf16.msra.mxu0 0
        %566 = vmatprep.subr.bf16.mxu0 0
        %567 = vmatpush1.bf16.msra.mxu0 0
        %568 = vmatprep.subr.bf16.mxu0 0
        %569 = vmatpush1.bf16.msra.mxu0 0
        %570 = vmatprep.subr.bf16.mxu0 0
        %571 = vmatpush1.bf16.msra.mxu0 0
        %572 = vmatprep.subr.bf16.mxu0 0
        %573 = vmatpush1.bf16.msra.mxu0 %v508
        %574 = vmatprep.subr.bf16.mxu0 0
        %575 = vmatpush1.bf16.msra.mxu0 %v507
        %576 = vmatprep.subr.bf16.mxu0 0
        %577 = vmatpush2.bf16.msra.mxu0 0
        %578 = vmatprep.subr.bf16.mxu0 0
        %579 = vmatpush2.bf16.msra.mxu0 0
        %580 = vmatprep.subr.bf16.mxu0 0
        %581 = vmatpush2.bf16.msra.mxu0 0
        %582 = vmatprep.subr.bf16.mxu0 0
        %583 = vmatpush2.bf16.msra.mxu0 0
        %584 = vmatprep.subr.bf16.mxu0 0
        %585 = vmatpush2.bf16.msra.mxu0 0
        %586 = vmatprep.subr.bf16.mxu0 0
        %587 = vmatpush2.bf16.msra.mxu0 0
        %588 = vmatprep.subr.bf16.mxu0 0
        %589 = vmatpush2.bf16.msra.mxu0 0
        %590 = vmatprep.subr.bf16.mxu0 0
        %591 = vmatpush2.bf16.msra.mxu0 0
        %592 = vmatprep.mubr.bf16.mxu0 0
        %593 = vmatmul.mubr.bf16.gmra.mxu0 %v513
        %v594 = vpop.f32.mrf.mxu0
        %v595 = vadd.f32 %v498, %v594
        %v596 = vpop.f32.mrf.mxu0
        %v597 = vpop.f32.mrf.mxu0
        %v598 = vadd.f32 %v498, %v597
        %v599 = vpop.f32.mrf.mxu0
        %600 = vmatprep.mubr.bf16.mxu0 0
        %601 = vmatmul.mubr.bf16.gmra.mxu0 %v516
        %v602 = vpop.f32.mrf.mxu0
        %v603 = vadd.f32 %v498, %v602
        %v604 = vpop.f32.mrf.mxu0
        %v605 = vpop.f32.mrf.mxu0
        %v606 = vadd.f32 %v498, %v605
        %v607 = vpop.f32.mrf.mxu0
        %608 = vmatprep.mubr.bf16.mxu0 0
        %609 = vmatmul.mubr.bf16.gmra.mxu0 %v519
        %v610 = vpop.f32.mrf.mxu0
        %v611 = vadd.f32 %v498, %v610
        %v612 = vpop.f32.mrf.mxu0
        %v613 = vpop.f32.mrf.mxu0
        %v614 = vadd.f32 %v498, %v613
        %v615 = vpop.f32.mrf.mxu0
        %616 = vmatprep.mubr.bf16.mxu0 0
        %617 = vmatmul.mubr.bf16.gmra.mxu0 %v522
        %v618 = vpop.f32.mrf.mxu0
        %v619 = vadd.f32 %v498, %v618
        %v620 = vpop.f32.mrf.mxu0
        %v621 = vpop.f32.mrf.mxu0
        %v622 = vadd.f32 %v498, %v621
        %v623 = vpop.f32.mrf.mxu0
        %624 = vmatprep.mubr.bf16.mxu0 0
        %625 = vmatmul.mubr.bf16.gmra.mxu0 %v525
        %v626 = vpop.f32.mrf.mxu0
        %v627 = vadd.f32 %v498, %v626
        %v628 = vpop.f32.mrf.mxu0
        %v629 = vpop.f32.mrf.mxu0
        %v630 = vadd.f32 %v498, %v629
        %v631 = vpop.f32.mrf.mxu0
        %632 = vmatprep.mubr.bf16.mxu0 0
        %633 = vmatmul.mubr.bf16.gmra.mxu0 %v528
        %v634 = vpop.f32.mrf.mxu0
        %v635 = vadd.f32 %v498, %v634
        %v636 = vpop.f32.mrf.mxu0
        %v637 = vpop.f32.mrf.mxu0
        %v638 = vadd.f32 %v498, %v637
        %v639 = vpop.f32.mrf.mxu0
        %640 = vmatprep.mubr.bf16.mxu0 0
        %641 = vmatmul.mubr.bf16.gmra.mxu0 %v531
        %v642 = vpop.f32.mrf.mxu0
        %v643 = vadd.f32 %v498, %v642
        %v644 = vpop.f32.mrf.mxu0
        %v645 = vpop.f32.mrf.mxu0
        %v646 = vadd.f32 %v498, %v645
        %v647 = vpop.f32.mrf.mxu0
        %648 = vmatprep.mubr.bf16.mxu0 0
        %649 = vmatmul.mubr.bf16.gmra.mxu0 %v534
        %v650 = vpop.f32.mrf.mxu0
        %v651 = vadd.f32 %v498, %v650
        %v652 = vpop.f32.mrf.mxu0
        %v653 = vpop.f32.mrf.mxu0
        %v654 = vadd.f32 %v498, %v653
        %v655 = vpop.f32.mrf.mxu0
        %656 = vmatprep.mubr.bf16.mxu0 0
        %657 = vmatmul.mubr.bf16.gmra.mxu0 %v537
        %v658 = vpop.f32.mrf.mxu0
        %v659 = vadd.f32 %v498, %v658
        %v660 = vpop.f32.mrf.mxu0
        %v661 = vpop.f32.mrf.mxu0
        %v662 = vadd.f32 %v498, %v661
        %v663 = vpop.f32.mrf.mxu0
        %664 = vmatprep.mubr.bf16.mxu0 0
        %665 = vmatmul.mubr.bf16.gmra.mxu0 %v540
        %v666 = vpop.f32.mrf.mxu0
        %v667 = vadd.f32 %v498, %v666
        %v668 = vpop.f32.mrf.mxu0
        %v669 = vpop.f32.mrf.mxu0
        %v670 = vadd.f32 %v498, %v669
        %v671 = vpop.f32.mrf.mxu0
        %672 = vmatprep.mubr.bf16.mxu0 0
        %673 = vmatmul.mubr.bf16.gmra.mxu0 %v543
        %v674 = vpop.f32.mrf.mxu0
        %v675 = vadd.f32 %v498, %v674
        %v676 = vpop.f32.mrf.mxu0
        %v677 = vpop.f32.mrf.mxu0
        %v678 = vadd.f32 %v498, %v677
        %v679 = vpop.f32.mrf.mxu0
        %680 = vmatprep.mubr.bf16.mxu0 0
        %681 = vmatmul.mubr.bf16.gmra.mxu0 %v546
        %v682 = vpop.f32.mrf.mxu0
        %v683 = vadd.f32 %v498, %v682
        %v684 = vpop.f32.mrf.mxu0
        %v685 = vpop.f32.mrf.mxu0
        %v686 = vadd.f32 %v498, %v685
        %v687 = vpop.f32.mrf.mxu0
        %688 = vmatprep.mubr.bf16.mxu0 0
        %689 = vmatmul.mubr.bf16.gmra.mxu0 %v549
        %v690 = vpop.f32.mrf.mxu0
        %v691 = vadd.f32 %v498, %v690
        %v692 = vpop.f32.mrf.mxu0
        %v693 = vpop.f32.mrf.mxu0
        %v694 = vadd.f32 %v498, %v693
        %v695 = vpop.f32.mrf.mxu0
        %696 = vmatprep.mubr.bf16.mxu0 0
        %697 = vmatmul.mubr.bf16.gmra.mxu0 %v552
        %v698 = vpop.f32.mrf.mxu0
        %v699 = vadd.f32 %v498, %v698
        %v700 = vpop.f32.mrf.mxu0
        %v701 = vpop.f32.mrf.mxu0
        %v702 = vadd.f32 %v498, %v701
        %v703 = vpop.f32.mrf.mxu0
        %704 = vmatprep.mubr.bf16.mxu0 0
        %705 = vmatmul.mubr.bf16.gmra.mxu0 %v555
        %v706 = vpop.f32.mrf.mxu0
        %v707 = vadd.f32 %v498, %v706
        %v708 = vpop.f32.mrf.mxu0
        %v709 = vpop.f32.mrf.mxu0
        %v710 = vadd.f32 %v498, %v709
        %v711 = vpop.f32.mrf.mxu0
        %712 = vmatprep.mubr.bf16.mxu0 0
        %713 = vmatmul.mubr.bf16.gmra.mxu0 %v558
        %v714 = vpop.f32.mrf.mxu0
        %v715 = vadd.f32 %v498, %v714
        %v716 = vpop.f32.mrf.mxu0
        %v717 = vpop.f32.mrf.mxu0
        %v718 = vadd.f32 %v498, %v717
        %v719 = vpop.f32.mrf.mxu0
        %720 = vdwg.mxu0
        %v721 = vmax.f32 %v595, 0.0
        %v722 = vmax.f32 %v598, 0.0
        %v723 = vmax.f32 %v603, 0.0
        %v724 = vmax.f32 %v606, 0.0
        %v725 = vmax.f32 %v611, 0.0
        %v726 = vmax.f32 %v614, 0.0
        %v727 = vmax.f32 %v619, 0.0
        %v728 = vmax.f32 %v622, 0.0
        %v729 = vmax.f32 %v627, 0.0
        %v730 = vmax.f32 %v630, 0.0
        %v731 = vmax.f32 %v635, 0.0
        %v732 = vmax.f32 %v638, 0.0
        %v733 = vmax.f32 %v643, 0.0
        %v734 = vmax.f32 %v646, 0.0
        %v735 = vmax.f32 %v651, 0.0
        %v736 = vmax.f32 %v654, 0.0
        %v737 = vmax.f32 %v659, 0.0
        %v738 = vmax.f32 %v662, 0.0
        %v739 = vmax.f32 %v667, 0.0
        %v740 = vmax.f32 %v670, 0.0
        %v741 = vmax.f32 %v675, 0.0
        %v742 = vmax.f32 %v678, 0.0
        %v743 = vmax.f32 %v683, 0.0
        %v744 = vmax.f32 %v686, 0.0
        %v745 = vmax.f32 %v691, 0.0
        %v746 = vmax.f32 %v694, 0.0
        %v747 = vmax.f32 %v699, 0.0
        %v748 = vmax.f32 %v702, 0.0
        %v749 = vmax.f32 %v707, 0.0
        %v750 = vmax.f32 %v710, 0.0
        %v751 = vmax.f32 %v715, 0.0
        %v752 = vmax.f32 %v718, 0.0
        %v753 = vpack.c.bf16 %v722, %v721
        %v754 = vpack.c.bf16 %v724, %v723
        %v755 = vpack.c.bf16 %v726, %v725
        %v756 = vpack.c.bf16 %v728, %v727
        %v757 = vpack.c.bf16 %v730, %v729
        %v758 = vpack.c.bf16 %v732, %v731
        %v759 = vpack.c.bf16 %v734, %v733
        %v760 = vpack.c.bf16 %v736, %v735
        %v761 = vpack.c.bf16 %v738, %v737
        %v762 = vpack.c.bf16 %v740, %v739
        %v763 = vpack.c.bf16 %v742, %v741
        %v764 = vpack.c.bf16 %v744, %v743
        %v765 = vpack.c.bf16 %v746, %v745
        %v766 = vpack.c.bf16 %v748, %v747
        %v767 = vpack.c.bf16 %v750, %v749
        %v768 = vpack.c.bf16 %v752, %v751
        %s769 = scalar_lea.vmem %s1, 32
        %v770 = vld [vmem:[%s769] sm:$0xf]
        %v771 = vld [vmem:[%s769 + $0x4] sm:$0xf]
        %v772 = vld [vmem:[%s769 + $0x8] sm:$0xf]
        %v773 = vld [vmem:[%s769 + $0xc] sm:$0xf]
        %v774 = vld [vmem:[%s2 + $0x2] sm:$0x1]
        %v775 = vlaneseq
        %v776 = vshrl.u32 %v775, 7
        %v777 = vsub.s32 0, %v776
        %v778 = vrot.slane %v774, %v777
        %v783 = vunpack.c.l.b16 %v770
        %v784 = vunpack.c.l.b16 %v771
        %v785 = vunpack.c.l.b16 %v772
        %v786 = vunpack.c.l.b16 %v773
        %v787 = vpack.c.b16 %v784, %v783
        %v788 = vpack.c.b16 %v786, %v785
        %v792 = vsel %vm511, %v753, 0
        %v795 = vsel %vm511, %v754, 0
        %v798 = vsel %vm511, %v755, 0
        %v801 = vsel %vm511, %v756, 0
        %v804 = vsel %vm511, %v757, 0
        %v807 = vsel %vm511, %v758, 0
        %v810 = vsel %vm511, %v759, 0
        %v813 = vsel %vm511, %v760, 0
        %v816 = vsel %vm511, %v761, 0
        %v819 = vsel %vm511, %v762, 0
        %v822 = vsel %vm511, %v763, 0
        %v825 = vsel %vm511, %v764, 0
        %v828 = vsel %vm511, %v765, 0
        %v831 = vsel %vm511, %v766, 0
        %v834 = vsel %vm511, %v767, 0
        %v837 = vsel %vm511, %v768, 0
        %839 = vmatprep.subr.bf16.mxu0 0
        %840 = vmatpush1.bf16.msra.mxu0 0
        %841 = vmatprep.subr.bf16.mxu0 0
        %842 = vmatpush1.bf16.msra.mxu0 0
        %843 = vmatprep.subr.bf16.mxu0 0
        %844 = vmatpush1.bf16.msra.mxu0 0
        %845 = vmatprep.subr.bf16.mxu0 0
        %846 = vmatpush1.bf16.msra.mxu0 0
        %847 = vmatprep.subr.bf16.mxu0 0
        %848 = vmatpush1.bf16.msra.mxu0 0
        %849 = vmatprep.subr.bf16.mxu0 0
        %850 = vmatpush1.bf16.msra.mxu0 0
        %851 = vmatprep.subr.bf16.mxu0 0
        %852 = vmatpush1.bf16.msra.mxu0 %v788
        %853 = vmatprep.subr.bf16.mxu0 0
        %854 = vmatpush1.bf16.msra.mxu0 %v787
        %855 = vmatprep.subr.bf16.mxu0 0
        %856 = vmatpush2.bf16.msra.mxu0 0
        %857 = vmatprep.subr.bf16.mxu0 0
        %858 = vmatpush2.bf16.msra.mxu0 0
        %859 = vmatprep.subr.bf16.mxu0 0
        %860 = vmatpush2.bf16.msra.mxu0 0
        %861 = vmatprep.subr.bf16.mxu0 0
        %862 = vmatpush2.bf16.msra.mxu0 0
        %863 = vmatprep.subr.bf16.mxu0 0
        %864 = vmatpush2.bf16.msra.mxu0 0
        %865 = vmatprep.subr.bf16.mxu0 0
        %866 = vmatpush2.bf16.msra.mxu0 0
        %867 = vmatprep.subr.bf16.mxu0 0
        %868 = vmatpush2.bf16.msra.mxu0 0
        %869 = vmatprep.subr.bf16.mxu0 0
        %870 = vmatpush2.bf16.msra.mxu0 0
        %871 = vmatprep.mubr.bf16.mxu0 0
        %872 = vmatmul.mubr.bf16.gmra.mxu0 %v792
        %v873 = vpop.f32.mrf.mxu0
        %v874 = vadd.f32 %v778, %v873
        %v875 = vpop.f32.mrf.mxu0
        %v876 = vpop.f32.mrf.mxu0
        %v877 = vadd.f32 %v778, %v876
        %v878 = vpop.f32.mrf.mxu0
        %879 = vmatprep.mubr.bf16.mxu0 0
        %880 = vmatmul.mubr.bf16.gmra.mxu0 %v795
        %v881 = vpop.f32.mrf.mxu0
        %v882 = vadd.f32 %v778, %v881
        %v883 = vpop.f32.mrf.mxu0
        %v884 = vpop.f32.mrf.mxu0
        %v885 = vadd.f32 %v778, %v884
        %v886 = vpop.f32.mrf.mxu0
        %887 = vmatprep.mubr.bf16.mxu0 0
        %888 = vmatmul.mubr.bf16.gmra.mxu0 %v798
        %v889 = vpop.f32.mrf.mxu0
        %v890 = vadd.f32 %v778, %v889
        %v891 = vpop.f32.mrf.mxu0
        %v892 = vpop.f32.mrf.mxu0
        %v893 = vadd.f32 %v778, %v892
        %v894 = vpop.f32.mrf.mxu0
        %895 = vmatprep.mubr.bf16.mxu0 0
        %896 = vmatmul.mubr.bf16.gmra.mxu0 %v801
        %v897 = vpop.f32.mrf.mxu0
        %v898 = vadd.f32 %v778, %v897
        %v899 = vpop.f32.mrf.mxu0
        %v900 = vpop.f32.mrf.mxu0
        %v901 = vadd.f32 %v778, %v900
        %v902 = vpop.f32.mrf.mxu0
        %903 = vmatprep.mubr.bf16.mxu0 0
        %904 = vmatmul.mubr.bf16.gmra.mxu0 %v804
        %v905 = vpop.f32.mrf.mxu0
        %v906 = vadd.f32 %v778, %v905
        %v907 = vpop.f32.mrf.mxu0
        %v908 = vpop.f32.mrf.mxu0
        %v909 = vadd.f32 %v778, %v908
        %v910 = vpop.f32.mrf.mxu0
        %911 = vmatprep.mubr.bf16.mxu0 0
        %912 = vmatmul.mubr.bf16.gmra.mxu0 %v807
        %v913 = vpop.f32.mrf.mxu0
        %v914 = vadd.f32 %v778, %v913
        %v915 = vpop.f32.mrf.mxu0
        %v916 = vpop.f32.mrf.mxu0
        %v917 = vadd.f32 %v778, %v916
        %v918 = vpop.f32.mrf.mxu0
        %919 = vmatprep.mubr.bf16.mxu0 0
        %920 = vmatmul.mubr.bf16.gmra.mxu0 %v810
        %v921 = vpop.f32.mrf.mxu0
        %v922 = vadd.f32 %v778, %v921
        %v923 = vpop.f32.mrf.mxu0
        %v924 = vpop.f32.mrf.mxu0
        %v925 = vadd.f32 %v778, %v924
        %v926 = vpop.f32.mrf.mxu0
        %927 = vmatprep.mubr.bf16.mxu0 0
        %928 = vmatmul.mubr.bf16.gmra.mxu0 %v813
        %v929 = vpop.f32.mrf.mxu0
        %v930 = vadd.f32 %v778, %v929
        %v931 = vpop.f32.mrf.mxu0
        %v932 = vpop.f32.mrf.mxu0
        %v933 = vadd.f32 %v778, %v932
        %v934 = vpop.f32.mrf.mxu0
        %935 = vmatprep.mubr.bf16.mxu0 0
        %936 = vmatmul.mubr.bf16.gmra.mxu0 %v816
        %v937 = vpop.f32.mrf.mxu0
        %v938 = vadd.f32 %v778, %v937
        %v939 = vpop.f32.mrf.mxu0
        %v940 = vpop.f32.mrf.mxu0
        %v941 = vadd.f32 %v778, %v940
        %v942 = vpop.f32.mrf.mxu0
        %943 = vmatprep.mubr.bf16.mxu0 0
        %944 = vmatmul.mubr.bf16.gmra.mxu0 %v819
        %v945 = vpop.f32.mrf.mxu0
        %v946 = vadd.f32 %v778, %v945
        %v947 = vpop.f32.mrf.mxu0
        %v948 = vpop.f32.mrf.mxu0
        %v949 = vadd.f32 %v778, %v948
        %v950 = vpop.f32.mrf.mxu0
        %951 = vmatprep.mubr.bf16.mxu0 0
        %952 = vmatmul.mubr.bf16.gmra.mxu0 %v822
        %v953 = vpop.f32.mrf.mxu0
        %v954 = vadd.f32 %v778, %v953
        %v955 = vpop.f32.mrf.mxu0
        %v956 = vpop.f32.mrf.mxu0
        %v957 = vadd.f32 %v778, %v956
        %v958 = vpop.f32.mrf.mxu0
        %959 = vmatprep.mubr.bf16.mxu0 0
        %960 = vmatmul.mubr.bf16.gmra.mxu0 %v825
        %v961 = vpop.f32.mrf.mxu0
        %v962 = vadd.f32 %v778, %v961
        %v963 = vpop.f32.mrf.mxu0
        %v964 = vpop.f32.mrf.mxu0
        %v965 = vadd.f32 %v778, %v964
        %v966 = vpop.f32.mrf.mxu0
        %967 = vmatprep.mubr.bf16.mxu0 0
        %968 = vmatmul.mubr.bf16.gmra.mxu0 %v828
        %v969 = vpop.f32.mrf.mxu0
        %v970 = vadd.f32 %v778, %v969
        %v971 = vpop.f32.mrf.mxu0
        %v972 = vpop.f32.mrf.mxu0
        %v973 = vadd.f32 %v778, %v972
        %v974 = vpop.f32.mrf.mxu0
        %975 = vmatprep.mubr.bf16.mxu0 0
        %976 = vmatmul.mubr.bf16.gmra.mxu0 %v831
        %v977 = vpop.f32.mrf.mxu0
        %v978 = vadd.f32 %v778, %v977
        %v979 = vpop.f32.mrf.mxu0
        %v980 = vpop.f32.mrf.mxu0
        %v981 = vadd.f32 %v778, %v980
        %v982 = vpop.f32.mrf.mxu0
        %983 = vmatprep.mubr.bf16.mxu0 0
        %984 = vmatmul.mubr.bf16.gmra.mxu0 %v834
        %v985 = vpop.f32.mrf.mxu0
        %v986 = vadd.f32 %v778, %v985
        %v987 = vpop.f32.mrf.mxu0
        %v988 = vpop.f32.mrf.mxu0
        %v989 = vadd.f32 %v778, %v988
        %v990 = vpop.f32.mrf.mxu0
        %991 = vmatprep.mubr.bf16.mxu0 0
        %992 = vmatmul.mubr.bf16.gmra.mxu0 %v837
        %v993 = vpop.f32.mrf.mxu0
        %v994 = vadd.f32 %v778, %v993
        %v995 = vpop.f32.mrf.mxu0
        %v996 = vpop.f32.mrf.mxu0
        %v997 = vadd.f32 %v778, %v996
        %v998 = vpop.f32.mrf.mxu0
        %999 = vdwg.mxu0
        %1032 = vrot.lane.b32.xlu0 %v595, 96
        %v1033 = vpop.permute.xlu0 %1032
        %1034 = vrot.lane.b32.xlu0 %v598, 96
        %v1035 = vpop.permute.xlu0 %1034
        %1036 = vrot.lane.b32.xlu0 %v603, 96
        %v1037 = vpop.permute.xlu0 %1036
        %1038 = vrot.lane.b32.xlu0 %v606, 96
        %v1039 = vpop.permute.xlu0 %1038
        %1040 = vrot.lane.b32.xlu0 %v611, 96
        %v1041 = vpop.permute.xlu0 %1040
        %1042 = vrot.lane.b32.xlu0 %v614, 96
        %v1043 = vpop.permute.xlu0 %1042
        %1044 = vrot.lane.b32.xlu0 %v619, 96
        %v1045 = vpop.permute.xlu0 %1044
        %1046 = vrot.lane.b32.xlu0 %v622, 96
        %v1047 = vpop.permute.xlu0 %1046
        %1048 = vrot.lane.b32.xlu0 %v627, 96
        %v1049 = vpop.permute.xlu0 %1048
        %1050 = vrot.lane.b32.xlu0 %v630, 96
        %v1051 = vpop.permute.xlu0 %1050
        %1052 = vrot.lane.b32.xlu0 %v635, 96
        %v1053 = vpop.permute.xlu0 %1052
        %1054 = vrot.lane.b32.xlu0 %v638, 96
        %v1055 = vpop.permute.xlu0 %1054
        %1056 = vrot.lane.b32.xlu0 %v643, 96
        %v1057 = vpop.permute.xlu0 %1056
        %1058 = vrot.lane.b32.xlu0 %v646, 96
        %v1059 = vpop.permute.xlu0 %1058
        %1060 = vrot.lane.b32.xlu0 %v651, 96
        %v1061 = vpop.permute.xlu0 %1060
        %1062 = vrot.lane.b32.xlu0 %v654, 96
        %v1063 = vpop.permute.xlu0 %1062
        %1064 = vrot.lane.b32.xlu0 %v659, 96
        %v1065 = vpop.permute.xlu0 %1064
        %1066 = vrot.lane.b32.xlu0 %v662, 96
        %v1067 = vpop.permute.xlu0 %1066
        %1068 = vrot.lane.b32.xlu0 %v667, 96
        %v1069 = vpop.permute.xlu0 %1068
        %1070 = vrot.lane.b32.xlu0 %v670, 96
        %v1071 = vpop.permute.xlu0 %1070
        %1072 = vrot.lane.b32.xlu0 %v675, 96
        %v1073 = vpop.permute.xlu0 %1072
        %1074 = vrot.lane.b32.xlu0 %v678, 96
        %v1075 = vpop.permute.xlu0 %1074
        %1076 = vrot.lane.b32.xlu0 %v683, 96
        %v1077 = vpop.permute.xlu0 %1076
        %1078 = vrot.lane.b32.xlu0 %v686, 96
        %v1079 = vpop.permute.xlu0 %1078
        %1080 = vrot.lane.b32.xlu0 %v691, 96
        %v1081 = vpop.permute.xlu0 %1080
        %1082 = vrot.lane.b32.xlu0 %v694, 96
        %v1083 = vpop.permute.xlu0 %1082
        %1084 = vrot.lane.b32.xlu0 %v699, 96
        %v1085 = vpop.permute.xlu0 %1084
        %1086 = vrot.lane.b32.xlu0 %v702, 96
        %v1087 = vpop.permute.xlu0 %1086
        %1088 = vrot.lane.b32.xlu0 %v707, 96
        %v1089 = vpop.permute.xlu0 %1088
        %1090 = vrot.lane.b32.xlu0 %v710, 96
        %v1091 = vpop.permute.xlu0 %1090
        %1092 = vrot.lane.b32.xlu0 %v715, 96
        %v1093 = vpop.permute.xlu0 %1092
        %1094 = vrot.lane.b32.xlu0 %v718, 96
        %v1095 = vpop.permute.xlu0 %1094
        %v1128 = vadd.f32 %v874, %v1033
        %v1129 = vadd.f32 %v877, %v1035
        %v1130 = vadd.f32 %v882, %v1037
        %v1131 = vadd.f32 %v885, %v1039
        %v1132 = vadd.f32 %v890, %v1041
        %v1133 = vadd.f32 %v893, %v1043
        %v1134 = vadd.f32 %v898, %v1045
        %v1135 = vadd.f32 %v901, %v1047
        %v1136 = vadd.f32 %v906, %v1049
        %v1137 = vadd.f32 %v909, %v1051
        %v1138 = vadd.f32 %v914, %v1053
        %v1139 = vadd.f32 %v917, %v1055
        %v1140 = vadd.f32 %v922, %v1057
        %v1141 = vadd.f32 %v925, %v1059
        %v1142 = vadd.f32 %v930, %v1061
        %v1143 = vadd.f32 %v933, %v1063
        %v1144 = vadd.f32 %v938, %v1065
        %v1145 = vadd.f32 %v941, %v1067
        %v1146 = vadd.f32 %v946, %v1069
        %v1147 = vadd.f32 %v949, %v1071
        %v1148 = vadd.f32 %v954, %v1073
        %v1149 = vadd.f32 %v957, %v1075
        %v1150 = vadd.f32 %v962, %v1077
        %v1151 = vadd.f32 %v965, %v1079
        %v1152 = vadd.f32 %v970, %v1081
        %v1153 = vadd.f32 %v973, %v1083
        %v1154 = vadd.f32 %v978, %v1085
        %v1155 = vadd.f32 %v981, %v1087
        %v1156 = vadd.f32 %v986, %v1089
        %v1157 = vadd.f32 %v989, %v1091
        %v1158 = vadd.f32 %v994, %v1093
        %v1159 = vadd.f32 %v997, %v1095
        %v1160 = vmax.f32 %v1128, 0.0
        %v1161 = vmax.f32 %v1129, 0.0
        %v1162 = vmax.f32 %v1130, 0.0
        %v1163 = vmax.f32 %v1131, 0.0
        %v1164 = vmax.f32 %v1132, 0.0
        %v1165 = vmax.f32 %v1133, 0.0
        %v1166 = vmax.f32 %v1134, 0.0
        %v1167 = vmax.f32 %v1135, 0.0
        %v1168 = vmax.f32 %v1136, 0.0
        %v1169 = vmax.f32 %v1137, 0.0
        %v1170 = vmax.f32 %v1138, 0.0
        %v1171 = vmax.f32 %v1139, 0.0
        %v1172 = vmax.f32 %v1140, 0.0
        %v1173 = vmax.f32 %v1141, 0.0
        %v1174 = vmax.f32 %v1142, 0.0
        %v1175 = vmax.f32 %v1143, 0.0
        %v1176 = vmax.f32 %v1144, 0.0
        %v1177 = vmax.f32 %v1145, 0.0
        %v1178 = vmax.f32 %v1146, 0.0
        %v1179 = vmax.f32 %v1147, 0.0
        %v1180 = vmax.f32 %v1148, 0.0
        %v1181 = vmax.f32 %v1149, 0.0
        %v1182 = vmax.f32 %v1150, 0.0
        %v1183 = vmax.f32 %v1151, 0.0
        %v1184 = vmax.f32 %v1152, 0.0
        %v1185 = vmax.f32 %v1153, 0.0
        %v1186 = vmax.f32 %v1154, 0.0
        %v1187 = vmax.f32 %v1155, 0.0
        %v1188 = vmax.f32 %v1156, 0.0
        %v1189 = vmax.f32 %v1157, 0.0
        %v1190 = vmax.f32 %v1158, 0.0
        %v1191 = vmax.f32 %v1159, 0.0
        %v1192 = vpack.c.bf16 %v1161, %v1160
        %v1193 = vpack.c.bf16 %v1163, %v1162
        %v1194 = vpack.c.bf16 %v1165, %v1164
        %v1195 = vpack.c.bf16 %v1167, %v1166
        %v1196 = vpack.c.bf16 %v1169, %v1168
        %v1197 = vpack.c.bf16 %v1171, %v1170
        %v1198 = vpack.c.bf16 %v1173, %v1172
        %v1199 = vpack.c.bf16 %v1175, %v1174
        %v1200 = vpack.c.bf16 %v1177, %v1176
        %v1201 = vpack.c.bf16 %v1179, %v1178
        %v1202 = vpack.c.bf16 %v1181, %v1180
        %v1203 = vpack.c.bf16 %v1183, %v1182
        %v1204 = vpack.c.bf16 %v1185, %v1184
        %v1205 = vpack.c.bf16 %v1187, %v1186
        %v1206 = vpack.c.bf16 %v1189, %v1188
        %v1207 = vpack.c.bf16 %v1191, %v1190
        %s1208 = scalar_lea.vmem %s1, 48
        %v1209 = vld [vmem:[%s1208] sm:$0xf]
        %v1210 = vld [vmem:[%s1208 + $0x4] sm:$0xf]
        %v1211 = vld [vmem:[%s1208 + $0x8] sm:$0xf]
        %v1212 = vld [vmem:[%s1208 + $0xc] sm:$0xf]
        %v1213 = vld [vmem:[%s2 + $0x3] sm:$0x1]
        %v1214 = vlaneseq
        %v1215 = vshrl.u32 %v1214, 7
        %v1216 = vsub.s32 0, %v1215
        %v1217 = vrot.slane %v1213, %v1216
        %v1222 = vunpack.c.l.b16 %v1209
        %v1223 = vunpack.c.l.b16 %v1210
        %v1224 = vunpack.c.l.b16 %v1211
        %v1225 = vunpack.c.l.b16 %v1212
        %v1226 = vpack.c.b16 %v1223, %v1222
        %v1227 = vpack.c.b16 %v1225, %v1224
        %v1231 = vsel %vm511, %v1192, 0
        %v1234 = vsel %vm511, %v1193, 0
        %v1237 = vsel %vm511, %v1194, 0
        %v1240 = vsel %vm511, %v1195, 0
        %v1243 = vsel %vm511, %v1196, 0
        %v1246 = vsel %vm511, %v1197, 0
        %v1249 = vsel %vm511, %v1198, 0
        %v1252 = vsel %vm511, %v1199, 0
        %v1255 = vsel %vm511, %v1200, 0
        %v1258 = vsel %vm511, %v1201, 0
        %v1261 = vsel %vm511, %v1202, 0
        %v1264 = vsel %vm511, %v1203, 0
        %v1267 = vsel %vm511, %v1204, 0
        %v1270 = vsel %vm511, %v1205, 0
        %v1273 = vsel %vm511, %v1206, 0
        %v1276 = vsel %vm511, %v1207, 0
        %1278 = vmatprep.subr.bf16.mxu0 0
        %1279 = vmatpush1.bf16.msra.mxu0 0
        %1280 = vmatprep.subr.bf16.mxu0 0
        %1281 = vmatpush1.bf16.msra.mxu0 0
        %1282 = vmatprep.subr.bf16.mxu0 0
        %1283 = vmatpush1.bf16.msra.mxu0 0
        %1284 = vmatprep.subr.bf16.mxu0 0
        %1285 = vmatpush1.bf16.msra.mxu0 0
        %1286 = vmatprep.subr.bf16.mxu0 0
        %1287 = vmatpush1.bf16.msra.mxu0 0
        %1288 = vmatprep.subr.bf16.mxu0 0
        %1289 = vmatpush1.bf16.msra.mxu0 0
        %1290 = vmatprep.subr.bf16.mxu0 0
        %1291 = vmatpush1.bf16.msra.mxu0 %v1227
        %1292 = vmatprep.subr.bf16.mxu0 0
        %1293 = vmatpush1.bf16.msra.mxu0 %v1226
        %1294 = vmatprep.subr.bf16.mxu0 0
        %1295 = vmatpush2.bf16.msra.mxu0 0
        %1296 = vmatprep.subr.bf16.mxu0 0
        %1297 = vmatpush2.bf16.msra.mxu0 0
        %1298 = vmatprep.subr.bf16.mxu0 0
        %1299 = vmatpush2.bf16.msra.mxu0 0
        %1300 = vmatprep.subr.bf16.mxu0 0
        %1301 = vmatpush2.bf16.msra.mxu0 0
        %1302 = vmatprep.subr.bf16.mxu0 0
        %1303 = vmatpush2.bf16.msra.mxu0 0
        %1304 = vmatprep.subr.bf16.mxu0 0
        %1305 = vmatpush2.bf16.msra.mxu0 0
        %1306 = vmatprep.subr.bf16.mxu0 0
        %1307 = vmatpush2.bf16.msra.mxu0 0
        %1308 = vmatprep.subr.bf16.mxu0 0
        %1309 = vmatpush2.bf16.msra.mxu0 0
        %1310 = vmatprep.mubr.bf16.mxu0 0
        %1311 = vmatmul.mubr.bf16.gmra.mxu0 %v1231
        %v1312 = vpop.f32.mrf.mxu0
        %v1313 = vadd.f32 %v1217, %v1312
        %v1314 = vpop.f32.mrf.mxu0
        %v1315 = vpop.f32.mrf.mxu0
        %v1316 = vadd.f32 %v1217, %v1315
        %v1317 = vpop.f32.mrf.mxu0
        %1318 = vmatprep.mubr.bf16.mxu0 0
        %1319 = vmatmul.mubr.bf16.gmra.mxu0 %v1234
        %v1320 = vpop.f32.mrf.mxu0
        %v1321 = vadd.f32 %v1217, %v1320
        %v1322 = vpop.f32.mrf.mxu0
        %v1323 = vpop.f32.mrf.mxu0
        %v1324 = vadd.f32 %v1217, %v1323
        %v1325 = vpop.f32.mrf.mxu0
        %1326 = vmatprep.mubr.bf16.mxu0 0
        %1327 = vmatmul.mubr.bf16.gmra.mxu0 %v1237
        %v1328 = vpop.f32.mrf.mxu0
        %v1329 = vadd.f32 %v1217, %v1328
        %v1330 = vpop.f32.mrf.mxu0
        %v1331 = vpop.f32.mrf.mxu0
        %v1332 = vadd.f32 %v1217, %v1331
        %v1333 = vpop.f32.mrf.mxu0
        %1334 = vmatprep.mubr.bf16.mxu0 0
        %1335 = vmatmul.mubr.bf16.gmra.mxu0 %v1240
        %v1336 = vpop.f32.mrf.mxu0
        %v1337 = vadd.f32 %v1217, %v1336
        %v1338 = vpop.f32.mrf.mxu0
        %v1339 = vpop.f32.mrf.mxu0
        %v1340 = vadd.f32 %v1217, %v1339
        %v1341 = vpop.f32.mrf.mxu0
        %1342 = vmatprep.mubr.bf16.mxu0 0
        %1343 = vmatmul.mubr.bf16.gmra.mxu0 %v1243
        %v1344 = vpop.f32.mrf.mxu0
        %v1345 = vadd.f32 %v1217, %v1344
        %v1346 = vpop.f32.mrf.mxu0
        %v1347 = vpop.f32.mrf.mxu0
        %v1348 = vadd.f32 %v1217, %v1347
        %v1349 = vpop.f32.mrf.mxu0
        %1350 = vmatprep.mubr.bf16.mxu0 0
        %1351 = vmatmul.mubr.bf16.gmra.mxu0 %v1246
        %v1352 = vpop.f32.mrf.mxu0
        %v1353 = vadd.f32 %v1217, %v1352
        %v1354 = vpop.f32.mrf.mxu0
        %v1355 = vpop.f32.mrf.mxu0
        %v1356 = vadd.f32 %v1217, %v1355
        %v1357 = vpop.f32.mrf.mxu0
        %1358 = vmatprep.mubr.bf16.mxu0 0
        %1359 = vmatmul.mubr.bf16.gmra.mxu0 %v1249
        %v1360 = vpop.f32.mrf.mxu0
        %v1361 = vadd.f32 %v1217, %v1360
        %v1362 = vpop.f32.mrf.mxu0
        %v1363 = vpop.f32.mrf.mxu0
        %v1364 = vadd.f32 %v1217, %v1363
        %v1365 = vpop.f32.mrf.mxu0
        %1366 = vmatprep.mubr.bf16.mxu0 0
        %1367 = vmatmul.mubr.bf16.gmra.mxu0 %v1252
        %v1368 = vpop.f32.mrf.mxu0
        %v1369 = vadd.f32 %v1217, %v1368
        %v1370 = vpop.f32.mrf.mxu0
        %v1371 = vpop.f32.mrf.mxu0
        %v1372 = vadd.f32 %v1217, %v1371
        %v1373 = vpop.f32.mrf.mxu0
        %1374 = vmatprep.mubr.bf16.mxu0 0
        %1375 = vmatmul.mubr.bf16.gmra.mxu0 %v1255
        %v1376 = vpop.f32.mrf.mxu0
        %v1377 = vadd.f32 %v1217, %v1376
        %v1378 = vpop.f32.mrf.mxu0
        %v1379 = vpop.f32.mrf.mxu0
        %v1380 = vadd.f32 %v1217, %v1379
        %v1381 = vpop.f32.mrf.mxu0
        %1382 = vmatprep.mubr.bf16.mxu0 0
        %1383 = vmatmul.mubr.bf16.gmra.mxu0 %v1258
        %v1384 = vpop.f32.mrf.mxu0
        %v1385 = vadd.f32 %v1217, %v1384
        %v1386 = vpop.f32.mrf.mxu0
        %v1387 = vpop.f32.mrf.mxu0
        %v1388 = vadd.f32 %v1217, %v1387
        %v1389 = vpop.f32.mrf.mxu0
        %1390 = vmatprep.mubr.bf16.mxu0 0
        %1391 = vmatmul.mubr.bf16.gmra.mxu0 %v1261
        %v1392 = vpop.f32.mrf.mxu0
        %v1393 = vadd.f32 %v1217, %v1392
        %v1394 = vpop.f32.mrf.mxu0
        %v1395 = vpop.f32.mrf.mxu0
        %v1396 = vadd.f32 %v1217, %v1395
        %v1397 = vpop.f32.mrf.mxu0
        %1398 = vmatprep.mubr.bf16.mxu0 0
        %1399 = vmatmul.mubr.bf16.gmra.mxu0 %v1264
        %v1400 = vpop.f32.mrf.mxu0
        %v1401 = vadd.f32 %v1217, %v1400
        %v1402 = vpop.f32.mrf.mxu0
        %v1403 = vpop.f32.mrf.mxu0
        %v1404 = vadd.f32 %v1217, %v1403
        %v1405 = vpop.f32.mrf.mxu0
        %1406 = vmatprep.mubr.bf16.mxu0 0
        %1407 = vmatmul.mubr.bf16.gmra.mxu0 %v1267
        %v1408 = vpop.f32.mrf.mxu0
        %v1409 = vadd.f32 %v1217, %v1408
        %v1410 = vpop.f32.mrf.mxu0
        %v1411 = vpop.f32.mrf.mxu0
        %v1412 = vadd.f32 %v1217, %v1411
        %v1413 = vpop.f32.mrf.mxu0
        %1414 = vmatprep.mubr.bf16.mxu0 0
        %1415 = vmatmul.mubr.bf16.gmra.mxu0 %v1270
        %v1416 = vpop.f32.mrf.mxu0
        %v1417 = vadd.f32 %v1217, %v1416
        %v1418 = vpop.f32.mrf.mxu0
        %v1419 = vpop.f32.mrf.mxu0
        %v1420 = vadd.f32 %v1217, %v1419
        %v1421 = vpop.f32.mrf.mxu0
        %1422 = vmatprep.mubr.bf16.mxu0 0
        %1423 = vmatmul.mubr.bf16.gmra.mxu0 %v1273
        %v1424 = vpop.f32.mrf.mxu0
        %v1425 = vadd.f32 %v1217, %v1424
        %v1426 = vpop.f32.mrf.mxu0
        %v1427 = vpop.f32.mrf.mxu0
        %v1428 = vadd.f32 %v1217, %v1427
        %v1429 = vpop.f32.mrf.mxu0
        %1430 = vmatprep.mubr.bf16.mxu0 0
        %1431 = vmatmul.mubr.bf16.gmra.mxu0 %v1276
        %v1432 = vpop.f32.mrf.mxu0
        %v1433 = vadd.f32 %v1217, %v1432
        %v1434 = vpop.f32.mrf.mxu0
        %v1435 = vpop.f32.mrf.mxu0
        %v1436 = vadd.f32 %v1217, %v1435
        %v1437 = vpop.f32.mrf.mxu0
        %1438 = vdwg.mxu0
        %v1439 = vmax.f32 %v1313, 0.0
        %v1440 = vmax.f32 %v1316, 0.0
        %v1441 = vmax.f32 %v1321, 0.0
        %v1442 = vmax.f32 %v1324, 0.0
        %v1443 = vmax.f32 %v1329, 0.0
        %v1444 = vmax.f32 %v1332, 0.0
        %v1445 = vmax.f32 %v1337, 0.0
        %v1446 = vmax.f32 %v1340, 0.0
        %v1447 = vmax.f32 %v1345, 0.0
        %v1448 = vmax.f32 %v1348, 0.0
        %v1449 = vmax.f32 %v1353, 0.0
        %v1450 = vmax.f32 %v1356, 0.0
        %v1451 = vmax.f32 %v1361, 0.0
        %v1452 = vmax.f32 %v1364, 0.0
        %v1453 = vmax.f32 %v1369, 0.0
        %v1454 = vmax.f32 %v1372, 0.0
        %v1455 = vmax.f32 %v1377, 0.0
        %v1456 = vmax.f32 %v1380, 0.0
        %v1457 = vmax.f32 %v1385, 0.0
        %v1458 = vmax.f32 %v1388, 0.0
        %v1459 = vmax.f32 %v1393, 0.0
        %v1460 = vmax.f32 %v1396, 0.0
        %v1461 = vmax.f32 %v1401, 0.0
        %v1462 = vmax.f32 %v1404, 0.0
        %v1463 = vmax.f32 %v1409, 0.0
        %v1464 = vmax.f32 %v1412, 0.0
        %v1465 = vmax.f32 %v1417, 0.0
        %v1466 = vmax.f32 %v1420, 0.0
        %v1467 = vmax.f32 %v1425, 0.0
        %v1468 = vmax.f32 %v1428, 0.0
        %v1469 = vmax.f32 %v1433, 0.0
        %v1470 = vmax.f32 %v1436, 0.0
        %v1471 = vpack.c.bf16 %v1440, %v1439
        %v1472 = vpack.c.bf16 %v1442, %v1441
        %v1473 = vpack.c.bf16 %v1444, %v1443
        %v1474 = vpack.c.bf16 %v1446, %v1445
        %v1475 = vpack.c.bf16 %v1448, %v1447
        %v1476 = vpack.c.bf16 %v1450, %v1449
        %v1477 = vpack.c.bf16 %v1452, %v1451
        %v1478 = vpack.c.bf16 %v1454, %v1453
        %v1479 = vpack.c.bf16 %v1456, %v1455
        %v1480 = vpack.c.bf16 %v1458, %v1457
        %v1481 = vpack.c.bf16 %v1460, %v1459
        %v1482 = vpack.c.bf16 %v1462, %v1461
        %v1483 = vpack.c.bf16 %v1464, %v1463
        %v1484 = vpack.c.bf16 %v1466, %v1465
        %v1485 = vpack.c.bf16 %v1468, %v1467
        %v1486 = vpack.c.bf16 %v1470, %v1469
        %s1487 = scalar_lea.vmem %s1, 64
        %v1488 = vld [vmem:[%s1487] sm:$0xf]
        %v1489 = vld [vmem:[%s1487 + $0x4] sm:$0xf]
        %v1490 = vld [vmem:[%s1487 + $0x8] sm:$0xf]
        %v1491 = vld [vmem:[%s1487 + $0xc] sm:$0xf]
        %v1492 = vld [vmem:[%s2 + $0x4] sm:$0x1]
        %v1493 = vlaneseq
        %v1494 = vshrl.u32 %v1493, 7
        %v1495 = vsub.s32 0, %v1494
        %v1496 = vrot.slane %v1492, %v1495
        %v1501 = vunpack.c.l.b16 %v1488
        %v1502 = vunpack.c.l.b16 %v1489
        %v1503 = vunpack.c.l.b16 %v1490
        %v1504 = vunpack.c.l.b16 %v1491
        %v1505 = vpack.c.b16 %v1502, %v1501
        %v1506 = vpack.c.b16 %v1504, %v1503
        %v1510 = vsel %vm511, %v1471, 0
        %v1513 = vsel %vm511, %v1472, 0
        %v1516 = vsel %vm511, %v1473, 0
        %v1519 = vsel %vm511, %v1474, 0
        %v1522 = vsel %vm511, %v1475, 0
        %v1525 = vsel %vm511, %v1476, 0
        %v1528 = vsel %vm511, %v1477, 0
        %v1531 = vsel %vm511, %v1478, 0
        %v1534 = vsel %vm511, %v1479, 0
        %v1537 = vsel %vm511, %v1480, 0
        %v1540 = vsel %vm511, %v1481, 0
        %v1543 = vsel %vm511, %v1482, 0
        %v1546 = vsel %vm511, %v1483, 0
        %v1549 = vsel %vm511, %v1484, 0
        %v1552 = vsel %vm511, %v1485, 0
        %v1555 = vsel %vm511, %v1486, 0
        %1557 = vmatprep.subr.bf16.mxu0 0
        %1558 = vmatpush1.bf16.msra.mxu0 0
        %1559 = vmatprep.subr.bf16.mxu0 0
        %1560 = vmatpush1.bf16.msra.mxu0 0
        %1561 = vmatprep.subr.bf16.mxu0 0
        %1562 = vmatpush1.bf16.msra.mxu0 0
        %1563 = vmatprep.subr.bf16.mxu0 0
        %1564 = vmatpush1.bf16.msra.mxu0 0
        %1565 = vmatprep.subr.bf16.mxu0 0
        %1566 = vmatpush1.bf16.msra.mxu0 0
        %1567 = vmatprep.subr.bf16.mxu0 0
        %1568 = vmatpush1.bf16.msra.mxu0 0
        %1569 = vmatprep.subr.bf16.mxu0 0
        %1570 = vmatpush1.bf16.msra.mxu0 %v1506
        %1571 = vmatprep.subr.bf16.mxu0 0
        %1572 = vmatpush1.bf16.msra.mxu0 %v1505
        %1573 = vmatprep.subr.bf16.mxu0 0
        %1574 = vmatpush2.bf16.msra.mxu0 0
        %1575 = vmatprep.subr.bf16.mxu0 0
        %1576 = vmatpush2.bf16.msra.mxu0 0
        %1577 = vmatprep.subr.bf16.mxu0 0
        %1578 = vmatpush2.bf16.msra.mxu0 0
        %1579 = vmatprep.subr.bf16.mxu0 0
        %1580 = vmatpush2.bf16.msra.mxu0 0
        %1581 = vmatprep.subr.bf16.mxu0 0
        %1582 = vmatpush2.bf16.msra.mxu0 0
        %1583 = vmatprep.subr.bf16.mxu0 0
        %1584 = vmatpush2.bf16.msra.mxu0 0
        %1585 = vmatprep.subr.bf16.mxu0 0
        %1586 = vmatpush2.bf16.msra.mxu0 0
        %1587 = vmatprep.subr.bf16.mxu0 0
        %1588 = vmatpush2.bf16.msra.mxu0 0
        %1589 = vmatprep.mubr.bf16.mxu0 0
        %1590 = vmatmul.mubr.bf16.gmra.mxu0 %v1510
        %v1591 = vpop.f32.mrf.mxu0
        %v1592 = vadd.f32 %v1496, %v1591
        %v1593 = vpop.f32.mrf.mxu0
        %v1594 = vpop.f32.mrf.mxu0
        %v1595 = vadd.f32 %v1496, %v1594
        %v1596 = vpop.f32.mrf.mxu0
        %1597 = vmatprep.mubr.bf16.mxu0 0
        %1598 = vmatmul.mubr.bf16.gmra.mxu0 %v1513
        %v1599 = vpop.f32.mrf.mxu0
        %v1600 = vadd.f32 %v1496, %v1599
        %v1601 = vpop.f32.mrf.mxu0
        %v1602 = vpop.f32.mrf.mxu0
        %v1603 = vadd.f32 %v1496, %v1602
        %v1604 = vpop.f32.mrf.mxu0
        %1605 = vmatprep.mubr.bf16.mxu0 0
        %1606 = vmatmul.mubr.bf16.gmra.mxu0 %v1516
        %v1607 = vpop.f32.mrf.mxu0
        %v1608 = vadd.f32 %v1496, %v1607
        %v1609 = vpop.f32.mrf.mxu0
        %v1610 = vpop.f32.mrf.mxu0
        %v1611 = vadd.f32 %v1496, %v1610
        %v1612 = vpop.f32.mrf.mxu0
        %1613 = vmatprep.mubr.bf16.mxu0 0
        %1614 = vmatmul.mubr.bf16.gmra.mxu0 %v1519
        %v1615 = vpop.f32.mrf.mxu0
        %v1616 = vadd.f32 %v1496, %v1615
        %v1617 = vpop.f32.mrf.mxu0
        %v1618 = vpop.f32.mrf.mxu0
        %v1619 = vadd.f32 %v1496, %v1618
        %v1620 = vpop.f32.mrf.mxu0
        %1621 = vmatprep.mubr.bf16.mxu0 0
        %1622 = vmatmul.mubr.bf16.gmra.mxu0 %v1522
        %v1623 = vpop.f32.mrf.mxu0
        %v1624 = vadd.f32 %v1496, %v1623
        %v1625 = vpop.f32.mrf.mxu0
        %v1626 = vpop.f32.mrf.mxu0
        %v1627 = vadd.f32 %v1496, %v1626
        %v1628 = vpop.f32.mrf.mxu0
        %1629 = vmatprep.mubr.bf16.mxu0 0
        %1630 = vmatmul.mubr.bf16.gmra.mxu0 %v1525
        %v1631 = vpop.f32.mrf.mxu0
        %v1632 = vadd.f32 %v1496, %v1631
        %v1633 = vpop.f32.mrf.mxu0
        %v1634 = vpop.f32.mrf.mxu0
        %v1635 = vadd.f32 %v1496, %v1634
        %v1636 = vpop.f32.mrf.mxu0
        %1637 = vmatprep.mubr.bf16.mxu0 0
        %1638 = vmatmul.mubr.bf16.gmra.mxu0 %v1528
        %v1639 = vpop.f32.mrf.mxu0
        %v1640 = vadd.f32 %v1496, %v1639
        %v1641 = vpop.f32.mrf.mxu0
        %v1642 = vpop.f32.mrf.mxu0
        %v1643 = vadd.f32 %v1496, %v1642
        %v1644 = vpop.f32.mrf.mxu0
        %1645 = vmatprep.mubr.bf16.mxu0 0
        %1646 = vmatmul.mubr.bf16.gmra.mxu0 %v1531
        %v1647 = vpop.f32.mrf.mxu0
        %v1648 = vadd.f32 %v1496, %v1647
        %v1649 = vpop.f32.mrf.mxu0
        %v1650 = vpop.f32.mrf.mxu0
        %v1651 = vadd.f32 %v1496, %v1650
        %v1652 = vpop.f32.mrf.mxu0
        %1653 = vmatprep.mubr.bf16.mxu0 0
        %1654 = vmatmul.mubr.bf16.gmra.mxu0 %v1534
        %v1655 = vpop.f32.mrf.mxu0
        %v1656 = vadd.f32 %v1496, %v1655
        %v1657 = vpop.f32.mrf.mxu0
        %v1658 = vpop.f32.mrf.mxu0
        %v1659 = vadd.f32 %v1496, %v1658
        %v1660 = vpop.f32.mrf.mxu0
        %1661 = vmatprep.mubr.bf16.mxu0 0
        %1662 = vmatmul.mubr.bf16.gmra.mxu0 %v1537
        %v1663 = vpop.f32.mrf.mxu0
        %v1664 = vadd.f32 %v1496, %v1663
        %v1665 = vpop.f32.mrf.mxu0
        %v1666 = vpop.f32.mrf.mxu0
        %v1667 = vadd.f32 %v1496, %v1666
        %v1668 = vpop.f32.mrf.mxu0
        %1669 = vmatprep.mubr.bf16.mxu0 0
        %1670 = vmatmul.mubr.bf16.gmra.mxu0 %v1540
        %v1671 = vpop.f32.mrf.mxu0
        %v1672 = vadd.f32 %v1496, %v1671
        %v1673 = vpop.f32.mrf.mxu0
        %v1674 = vpop.f32.mrf.mxu0
        %v1675 = vadd.f32 %v1496, %v1674
        %v1676 = vpop.f32.mrf.mxu0
        %1677 = vmatprep.mubr.bf16.mxu0 0
        %1678 = vmatmul.mubr.bf16.gmra.mxu0 %v1543
        %v1679 = vpop.f32.mrf.mxu0
        %v1680 = vadd.f32 %v1496, %v1679
        %v1681 = vpop.f32.mrf.mxu0
        %v1682 = vpop.f32.mrf.mxu0
        %v1683 = vadd.f32 %v1496, %v1682
        %v1684 = vpop.f32.mrf.mxu0
        %1685 = vmatprep.mubr.bf16.mxu0 0
        %1686 = vmatmul.mubr.bf16.gmra.mxu0 %v1546
        %v1687 = vpop.f32.mrf.mxu0
        %v1688 = vadd.f32 %v1496, %v1687
        %v1689 = vpop.f32.mrf.mxu0
        %v1690 = vpop.f32.mrf.mxu0
        %v1691 = vadd.f32 %v1496, %v1690
        %v1692 = vpop.f32.mrf.mxu0
        %1693 = vmatprep.mubr.bf16.mxu0 0
        %1694 = vmatmul.mubr.bf16.gmra.mxu0 %v1549
        %v1695 = vpop.f32.mrf.mxu0
        %v1696 = vadd.f32 %v1496, %v1695
        %v1697 = vpop.f32.mrf.mxu0
        %v1698 = vpop.f32.mrf.mxu0
        %v1699 = vadd.f32 %v1496, %v1698
        %v1700 = vpop.f32.mrf.mxu0
        %1701 = vmatprep.mubr.bf16.mxu0 0
        %1702 = vmatmul.mubr.bf16.gmra.mxu0 %v1552
        %v1703 = vpop.f32.mrf.mxu0
        %v1704 = vadd.f32 %v1496, %v1703
        %v1705 = vpop.f32.mrf.mxu0
        %v1706 = vpop.f32.mrf.mxu0
        %v1707 = vadd.f32 %v1496, %v1706
        %v1708 = vpop.f32.mrf.mxu0
        %1709 = vmatprep.mubr.bf16.mxu0 0
        %1710 = vmatmul.mubr.bf16.gmra.mxu0 %v1555
        %v1711 = vpop.f32.mrf.mxu0
        %v1712 = vadd.f32 %v1496, %v1711
        %v1713 = vpop.f32.mrf.mxu0
        %v1714 = vpop.f32.mrf.mxu0
        %v1715 = vadd.f32 %v1496, %v1714
        %v1716 = vpop.f32.mrf.mxu0
        %1717 = vdwg.mxu0
        %1750 = vrot.lane.b32.xlu0 %v1313, 96
        %v1751 = vpop.permute.xlu0 %1750
        %1752 = vrot.lane.b32.xlu0 %v1316, 96
        %v1753 = vpop.permute.xlu0 %1752
        %1754 = vrot.lane.b32.xlu0 %v1321, 96
        %v1755 = vpop.permute.xlu0 %1754
        %1756 = vrot.lane.b32.xlu0 %v1324, 96
        %v1757 = vpop.permute.xlu0 %1756
        %1758 = vrot.lane.b32.xlu0 %v1329, 96
        %v1759 = vpop.permute.xlu0 %1758
        %1760 = vrot.lane.b32.xlu0 %v1332, 96
        %v1761 = vpop.permute.xlu0 %1760
        %1762 = vrot.lane.b32.xlu0 %v1337, 96
        %v1763 = vpop.permute.xlu0 %1762
        %1764 = vrot.lane.b32.xlu0 %v1340, 96
        %v1765 = vpop.permute.xlu0 %1764
        %1766 = vrot.lane.b32.xlu0 %v1345, 96
        %v1767 = vpop.permute.xlu0 %1766
        %1768 = vrot.lane.b32.xlu0 %v1348, 96
        %v1769 = vpop.permute.xlu0 %1768
        %1770 = vrot.lane.b32.xlu0 %v1353, 96
        %v1771 = vpop.permute.xlu0 %1770
        %1772 = vrot.lane.b32.xlu0 %v1356, 96
        %v1773 = vpop.permute.xlu0 %1772
        %1774 = vrot.lane.b32.xlu0 %v1361, 96
        %v1775 = vpop.permute.xlu0 %1774
        %1776 = vrot.lane.b32.xlu0 %v1364, 96
        %v1777 = vpop.permute.xlu0 %1776
        %1778 = vrot.lane.b32.xlu0 %v1369, 96
        %v1779 = vpop.permute.xlu0 %1778
        %1780 = vrot.lane.b32.xlu0 %v1372, 96
        %v1781 = vpop.permute.xlu0 %1780
        %1782 = vrot.lane.b32.xlu0 %v1377, 96
        %v1783 = vpop.permute.xlu0 %1782
        %1784 = vrot.lane.b32.xlu0 %v1380, 96
        %v1785 = vpop.permute.xlu0 %1784
        %1786 = vrot.lane.b32.xlu0 %v1385, 96
        %v1787 = vpop.permute.xlu0 %1786
        %1788 = vrot.lane.b32.xlu0 %v1388, 96
        %v1789 = vpop.permute.xlu0 %1788
        %1790 = vrot.lane.b32.xlu0 %v1393, 96
        %v1791 = vpop.permute.xlu0 %1790
        %1792 = vrot.lane.b32.xlu0 %v1396, 96
        %v1793 = vpop.permute.xlu0 %1792
        %1794 = vrot.lane.b32.xlu0 %v1401, 96
        %v1795 = vpop.permute.xlu0 %1794
        %1796 = vrot.lane.b32.xlu0 %v1404, 96
        %v1797 = vpop.permute.xlu0 %1796
        %1798 = vrot.lane.b32.xlu0 %v1409, 96
        %v1799 = vpop.permute.xlu0 %1798
        %1800 = vrot.lane.b32.xlu0 %v1412, 96
        %v1801 = vpop.permute.xlu0 %1800
        %1802 = vrot.lane.b32.xlu0 %v1417, 96
        %v1803 = vpop.permute.xlu0 %1802
        %1804 = vrot.lane.b32.xlu0 %v1420, 96
        %v1805 = vpop.permute.xlu0 %1804
        %1806 = vrot.lane.b32.xlu0 %v1425, 96
        %v1807 = vpop.permute.xlu0 %1806
        %1808 = vrot.lane.b32.xlu0 %v1428, 96
        %v1809 = vpop.permute.xlu0 %1808
        %1810 = vrot.lane.b32.xlu0 %v1433, 96
        %v1811 = vpop.permute.xlu0 %1810
        %1812 = vrot.lane.b32.xlu0 %v1436, 96
        %v1813 = vpop.permute.xlu0 %1812
        %v1846 = vadd.f32 %v1592, %v1751
        %v1847 = vadd.f32 %v1595, %v1753
        %v1848 = vadd.f32 %v1600, %v1755
        %v1849 = vadd.f32 %v1603, %v1757
        %v1850 = vadd.f32 %v1608, %v1759
        %v1851 = vadd.f32 %v1611, %v1761
        %v1852 = vadd.f32 %v1616, %v1763
        %v1853 = vadd.f32 %v1619, %v1765
        %v1854 = vadd.f32 %v1624, %v1767
        %v1855 = vadd.f32 %v1627, %v1769
        %v1856 = vadd.f32 %v1632, %v1771
        %v1857 = vadd.f32 %v1635, %v1773
        %v1858 = vadd.f32 %v1640, %v1775
        %v1859 = vadd.f32 %v1643, %v1777
        %v1860 = vadd.f32 %v1648, %v1779
        %v1861 = vadd.f32 %v1651, %v1781
        %v1862 = vadd.f32 %v1656, %v1783
        %v1863 = vadd.f32 %v1659, %v1785
        %v1864 = vadd.f32 %v1664, %v1787
        %v1865 = vadd.f32 %v1667, %v1789
        %v1866 = vadd.f32 %v1672, %v1791
        %v1867 = vadd.f32 %v1675, %v1793
        %v1868 = vadd.f32 %v1680, %v1795
        %v1869 = vadd.f32 %v1683, %v1797
        %v1870 = vadd.f32 %v1688, %v1799
        %v1871 = vadd.f32 %v1691, %v1801
        %v1872 = vadd.f32 %v1696, %v1803
        %v1873 = vadd.f32 %v1699, %v1805
        %v1874 = vadd.f32 %v1704, %v1807
        %v1875 = vadd.f32 %v1707, %v1809
        %v1876 = vadd.f32 %v1712, %v1811
        %v1877 = vadd.f32 %v1715, %v1813
        %v1878 = vmax.f32 %v1846, 0.0
        %v1879 = vmax.f32 %v1847, 0.0
        %v1880 = vmax.f32 %v1848, 0.0
        %v1881 = vmax.f32 %v1849, 0.0
        %v1882 = vmax.f32 %v1850, 0.0
        %v1883 = vmax.f32 %v1851, 0.0
        %v1884 = vmax.f32 %v1852, 0.0
        %v1885 = vmax.f32 %v1853, 0.0
        %v1886 = vmax.f32 %v1854, 0.0
        %v1887 = vmax.f32 %v1855, 0.0
        %v1888 = vmax.f32 %v1856, 0.0
        %v1889 = vmax.f32 %v1857, 0.0
        %v1890 = vmax.f32 %v1858, 0.0
        %v1891 = vmax.f32 %v1859, 0.0
        %v1892 = vmax.f32 %v1860, 0.0
        %v1893 = vmax.f32 %v1861, 0.0
        %v1894 = vmax.f32 %v1862, 0.0
        %v1895 = vmax.f32 %v1863, 0.0
        %v1896 = vmax.f32 %v1864, 0.0
        %v1897 = vmax.f32 %v1865, 0.0
        %v1898 = vmax.f32 %v1866, 0.0
        %v1899 = vmax.f32 %v1867, 0.0
        %v1900 = vmax.f32 %v1868, 0.0
        %v1901 = vmax.f32 %v1869, 0.0
        %v1902 = vmax.f32 %v1870, 0.0
        %v1903 = vmax.f32 %v1871, 0.0
        %v1904 = vmax.f32 %v1872, 0.0
        %v1905 = vmax.f32 %v1873, 0.0
        %v1906 = vmax.f32 %v1874, 0.0
        %v1907 = vmax.f32 %v1875, 0.0
        %v1908 = vmax.f32 %v1876, 0.0
        %v1909 = vmax.f32 %v1877, 0.0
        %v1910 = vpack.c.bf16 %v1879, %v1878
        %v1911 = vpack.c.bf16 %v1881, %v1880
        %v1912 = vpack.c.bf16 %v1883, %v1882
        %v1913 = vpack.c.bf16 %v1885, %v1884
        %v1914 = vpack.c.bf16 %v1887, %v1886
        %v1915 = vpack.c.bf16 %v1889, %v1888
        %v1916 = vpack.c.bf16 %v1891, %v1890
        %v1917 = vpack.c.bf16 %v1893, %v1892
        %v1918 = vpack.c.bf16 %v1895, %v1894
        %v1919 = vpack.c.bf16 %v1897, %v1896
        %v1920 = vpack.c.bf16 %v1899, %v1898
        %v1921 = vpack.c.bf16 %v1901, %v1900
        %v1922 = vpack.c.bf16 %v1903, %v1902
        %v1923 = vpack.c.bf16 %v1905, %v1904
        %v1924 = vpack.c.bf16 %v1907, %v1906
        %v1925 = vpack.c.bf16 %v1909, %v1908
        %s1926 = scalar_lea.vmem %s1, 80
        %v1927 = vld [vmem:[%s1926] sm:$0xf]
        %v1928 = vld [vmem:[%s1926 + $0x4] sm:$0xf]
        %v1929 = vld [vmem:[%s1926 + $0x8] sm:$0xf]
        %v1930 = vld [vmem:[%s1926 + $0xc] sm:$0xf]
        %v1931 = vld [vmem:[%s2 + $0x5] sm:$0x1]
        %v1932 = vlaneseq
        %v1933 = vshrl.u32 %v1932, 7
        %v1934 = vsub.s32 0, %v1933
        %v1935 = vrot.slane %v1931, %v1934
        %v1940 = vunpack.c.l.b16 %v1927
        %v1941 = vunpack.c.l.b16 %v1928
        %v1942 = vunpack.c.l.b16 %v1929
        %v1943 = vunpack.c.l.b16 %v1930
        %v1944 = vpack.c.b16 %v1941, %v1940
        %v1945 = vpack.c.b16 %v1943, %v1942
        %v1949 = vsel %vm511, %v1910, 0
        %v1952 = vsel %vm511, %v1911, 0
        %v1955 = vsel %vm511, %v1912, 0
        %v1958 = vsel %vm511, %v1913, 0
        %v1961 = vsel %vm511, %v1914, 0
        %v1964 = vsel %vm511, %v1915, 0
        %v1967 = vsel %vm511, %v1916, 0
        %v1970 = vsel %vm511, %v1917, 0
        %v1973 = vsel %vm511, %v1918, 0
        %v1976 = vsel %vm511, %v1919, 0
        %v1979 = vsel %vm511, %v1920, 0
        %v1982 = vsel %vm511, %v1921, 0
        %v1985 = vsel %vm511, %v1922, 0
        %v1988 = vsel %vm511, %v1923, 0
        %v1991 = vsel %vm511, %v1924, 0
        %v1994 = vsel %vm511, %v1925, 0
        %1996 = vmatprep.subr.bf16.mxu0 0
        %1997 = vmatpush1.bf16.msra.mxu0 0
        %1998 = vmatprep.subr.bf16.mxu0 0
        %1999 = vmatpush1.bf16.msra.mxu0 0
        %2000 = vmatprep.subr.bf16.mxu0 0
        %2001 = vmatpush1.bf16.msra.mxu0 0
        %2002 = vmatprep.subr.bf16.mxu0 0
        %2003 = vmatpush1.bf16.msra.mxu0 0
        %2004 = vmatprep.subr.bf16.mxu0 0
        %2005 = vmatpush1.bf16.msra.mxu0 0
        %2006 = vmatprep.subr.bf16.mxu0 0
        %2007 = vmatpush1.bf16.msra.mxu0 0
        %2008 = vmatprep.subr.bf16.mxu0 0
        %2009 = vmatpush1.bf16.msra.mxu0 %v1945
        %2010 = vmatprep.subr.bf16.mxu0 0
        %2011 = vmatpush1.bf16.msra.mxu0 %v1944
        %2012 = vmatprep.subr.bf16.mxu0 0
        %2013 = vmatpush2.bf16.msra.mxu0 0
        %2014 = vmatprep.subr.bf16.mxu0 0
        %2015 = vmatpush2.bf16.msra.mxu0 0
        %2016 = vmatprep.subr.bf16.mxu0 0
        %2017 = vmatpush2.bf16.msra.mxu0 0
        %2018 = vmatprep.subr.bf16.mxu0 0
        %2019 = vmatpush2.bf16.msra.mxu0 0
        %2020 = vmatprep.subr.bf16.mxu0 0
        %2021 = vmatpush2.bf16.msra.mxu0 0
        %2022 = vmatprep.subr.bf16.mxu0 0
        %2023 = vmatpush2.bf16.msra.mxu0 0
        %2024 = vmatprep.subr.bf16.mxu0 0
        %2025 = vmatpush2.bf16.msra.mxu0 0
        %2026 = vmatprep.subr.bf16.mxu0 0
        %2027 = vmatpush2.bf16.msra.mxu0 0
        %2028 = vmatprep.mubr.bf16.mxu0 0
        %2029 = vmatmul.mubr.bf16.gmra.mxu0 %v1949
        %v2030 = vpop.f32.mrf.mxu0
        %v2031 = vadd.f32 %v1935, %v2030
        %v2032 = vpop.f32.mrf.mxu0
        %v2033 = vpop.f32.mrf.mxu0
        %v2034 = vadd.f32 %v1935, %v2033
        %v2035 = vpop.f32.mrf.mxu0
        %2036 = vmatprep.mubr.bf16.mxu0 0
        %2037 = vmatmul.mubr.bf16.gmra.mxu0 %v1952
        %v2038 = vpop.f32.mrf.mxu0
        %v2039 = vadd.f32 %v1935, %v2038
        %v2040 = vpop.f32.mrf.mxu0
        %v2041 = vpop.f32.mrf.mxu0
        %v2042 = vadd.f32 %v1935, %v2041
        %v2043 = vpop.f32.mrf.mxu0
        %2044 = vmatprep.mubr.bf16.mxu0 0
        %2045 = vmatmul.mubr.bf16.gmra.mxu0 %v1955
        %v2046 = vpop.f32.mrf.mxu0
        %v2047 = vadd.f32 %v1935, %v2046
        %v2048 = vpop.f32.mrf.mxu0
        %v2049 = vpop.f32.mrf.mxu0
        %v2050 = vadd.f32 %v1935, %v2049
        %v2051 = vpop.f32.mrf.mxu0
        %2052 = vmatprep.mubr.bf16.mxu0 0
        %2053 = vmatmul.mubr.bf16.gmra.mxu0 %v1958
        %v2054 = vpop.f32.mrf.mxu0
        %v2055 = vadd.f32 %v1935, %v2054
        %v2056 = vpop.f32.mrf.mxu0
        %v2057 = vpop.f32.mrf.mxu0
        %v2058 = vadd.f32 %v1935, %v2057
        %v2059 = vpop.f32.mrf.mxu0
        %2060 = vmatprep.mubr.bf16.mxu0 0
        %2061 = vmatmul.mubr.bf16.gmra.mxu0 %v1961
        %v2062 = vpop.f32.mrf.mxu0
        %v2063 = vadd.f32 %v1935, %v2062
        %v2064 = vpop.f32.mrf.mxu0
        %v2065 = vpop.f32.mrf.mxu0
        %v2066 = vadd.f32 %v1935, %v2065
        %v2067 = vpop.f32.mrf.mxu0
        %2068 = vmatprep.mubr.bf16.mxu0 0
        %2069 = vmatmul.mubr.bf16.gmra.mxu0 %v1964
        %v2070 = vpop.f32.mrf.mxu0
        %v2071 = vadd.f32 %v1935, %v2070
        %v2072 = vpop.f32.mrf.mxu0
        %v2073 = vpop.f32.mrf.mxu0
        %v2074 = vadd.f32 %v1935, %v2073
        %v2075 = vpop.f32.mrf.mxu0
        %2076 = vmatprep.mubr.bf16.mxu0 0
        %2077 = vmatmul.mubr.bf16.gmra.mxu0 %v1967
        %v2078 = vpop.f32.mrf.mxu0
        %v2079 = vadd.f32 %v1935, %v2078
        %v2080 = vpop.f32.mrf.mxu0
        %v2081 = vpop.f32.mrf.mxu0
        %v2082 = vadd.f32 %v1935, %v2081
        %v2083 = vpop.f32.mrf.mxu0
        %2084 = vmatprep.mubr.bf16.mxu0 0
        %2085 = vmatmul.mubr.bf16.gmra.mxu0 %v1970
        %v2086 = vpop.f32.mrf.mxu0
        %v2087 = vadd.f32 %v1935, %v2086
        %v2088 = vpop.f32.mrf.mxu0
        %v2089 = vpop.f32.mrf.mxu0
        %v2090 = vadd.f32 %v1935, %v2089
        %v2091 = vpop.f32.mrf.mxu0
        %2092 = vmatprep.mubr.bf16.mxu0 0
        %2093 = vmatmul.mubr.bf16.gmra.mxu0 %v1973
        %v2094 = vpop.f32.mrf.mxu0
        %v2095 = vadd.f32 %v1935, %v2094
        %v2096 = vpop.f32.mrf.mxu0
        %v2097 = vpop.f32.mrf.mxu0
        %v2098 = vadd.f32 %v1935, %v2097
        %v2099 = vpop.f32.mrf.mxu0
        %2100 = vmatprep.mubr.bf16.mxu0 0
        %2101 = vmatmul.mubr.bf16.gmra.mxu0 %v1976
        %v2102 = vpop.f32.mrf.mxu0
        %v2103 = vadd.f32 %v1935, %v2102
        %v2104 = vpop.f32.mrf.mxu0
        %v2105 = vpop.f32.mrf.mxu0
        %v2106 = vadd.f32 %v1935, %v2105
        %v2107 = vpop.f32.mrf.mxu0
        %2108 = vmatprep.mubr.bf16.mxu0 0
        %2109 = vmatmul.mubr.bf16.gmra.mxu0 %v1979
        %v2110 = vpop.f32.mrf.mxu0
        %v2111 = vadd.f32 %v1935, %v2110
        %v2112 = vpop.f32.mrf.mxu0
        %v2113 = vpop.f32.mrf.mxu0
        %v2114 = vadd.f32 %v1935, %v2113
        %v2115 = vpop.f32.mrf.mxu0
        %2116 = vmatprep.mubr.bf16.mxu0 0
        %2117 = vmatmul.mubr.bf16.gmra.mxu0 %v1982
        %v2118 = vpop.f32.mrf.mxu0
        %v2119 = vadd.f32 %v1935, %v2118
        %v2120 = vpop.f32.mrf.mxu0
        %v2121 = vpop.f32.mrf.mxu0
        %v2122 = vadd.f32 %v1935, %v2121
        %v2123 = vpop.f32.mrf.mxu0
        %2124 = vmatprep.mubr.bf16.mxu0 0
        %2125 = vmatmul.mubr.bf16.gmra.mxu0 %v1985
        %v2126 = vpop.f32.mrf.mxu0
        %v2127 = vadd.f32 %v1935, %v2126
        %v2128 = vpop.f32.mrf.mxu0
        %v2129 = vpop.f32.mrf.mxu0
        %v2130 = vadd.f32 %v1935, %v2129
        %v2131 = vpop.f32.mrf.mxu0
        %2132 = vmatprep.mubr.bf16.mxu0 0
        %2133 = vmatmul.mubr.bf16.gmra.mxu0 %v1988
        %v2134 = vpop.f32.mrf.mxu0
        %v2135 = vadd.f32 %v1935, %v2134
        %v2136 = vpop.f32.mrf.mxu0
        %v2137 = vpop.f32.mrf.mxu0
        %v2138 = vadd.f32 %v1935, %v2137
        %v2139 = vpop.f32.mrf.mxu0
        %2140 = vmatprep.mubr.bf16.mxu0 0
        %2141 = vmatmul.mubr.bf16.gmra.mxu0 %v1991
        %v2142 = vpop.f32.mrf.mxu0
        %v2143 = vadd.f32 %v1935, %v2142
        %v2144 = vpop.f32.mrf.mxu0
        %v2145 = vpop.f32.mrf.mxu0
        %v2146 = vadd.f32 %v1935, %v2145
        %v2147 = vpop.f32.mrf.mxu0
        %2148 = vmatprep.mubr.bf16.mxu0 0
        %2149 = vmatmul.mubr.bf16.gmra.mxu0 %v1994
        %v2150 = vpop.f32.mrf.mxu0
        %v2151 = vadd.f32 %v1935, %v2150
        %v2152 = vpop.f32.mrf.mxu0
        %v2153 = vpop.f32.mrf.mxu0
        %v2154 = vadd.f32 %v1935, %v2153
        %v2155 = vpop.f32.mrf.mxu0
        %2156 = vdwg.mxu0
        %v2157 = vxor.u32 %v2031, 2147483648
        %v2158 = vxor.u32 %v2034, 2147483648
        %v2159 = vxor.u32 %v2039, 2147483648
        %v2160 = vxor.u32 %v2042, 2147483648
        %v2161 = vxor.u32 %v2047, 2147483648
        %v2162 = vxor.u32 %v2050, 2147483648
        %v2163 = vxor.u32 %v2055, 2147483648
        %v2164 = vxor.u32 %v2058, 2147483648
        %v2165 = vxor.u32 %v2063, 2147483648
        %v2166 = vxor.u32 %v2066, 2147483648
        %v2167 = vxor.u32 %v2071, 2147483648
        %v2168 = vxor.u32 %v2074, 2147483648
        %v2169 = vxor.u32 %v2079, 2147483648
        %v2170 = vxor.u32 %v2082, 2147483648
        %v2171 = vxor.u32 %v2087, 2147483648
        %v2172 = vxor.u32 %v2090, 2147483648
        %v2173 = vxor.u32 %v2095, 2147483648
        %v2174 = vxor.u32 %v2098, 2147483648
        %v2175 = vxor.u32 %v2103, 2147483648
        %v2176 = vxor.u32 %v2106, 2147483648
        %v2177 = vxor.u32 %v2111, 2147483648
        %v2178 = vxor.u32 %v2114, 2147483648
        %v2179 = vxor.u32 %v2119, 2147483648
        %v2180 = vxor.u32 %v2122, 2147483648
        %v2181 = vxor.u32 %v2127, 2147483648
        %v2182 = vxor.u32 %v2130, 2147483648
        %v2183 = vxor.u32 %v2135, 2147483648
        %v2184 = vxor.u32 %v2138, 2147483648
        %v2185 = vxor.u32 %v2143, 2147483648
        %v2186 = vxor.u32 %v2146, 2147483648
        %v2187 = vxor.u32 %v2151, 2147483648
        %v2188 = vxor.u32 %v2154, 2147483648
        %v2189 = vmul.f32 %v2157, 1.442695
        %v2190 = vpow.pop %v2189
        %v2191 = vmul.f32 %v2158, 1.442695
        %v2192 = vpow.pop %v2191
        %v2193 = vmul.f32 %v2159, 1.442695
        %v2194 = vpow.pop %v2193
        %v2195 = vmul.f32 %v2160, 1.442695
        %v2196 = vpow.pop %v2195
        %v2197 = vmul.f32 %v2161, 1.442695
        %v2198 = vpow.pop %v2197
        %v2199 = vmul.f32 %v2162, 1.442695
        %v2200 = vpow.pop %v2199
        %v2201 = vmul.f32 %v2163, 1.442695
        %v2202 = vpow.pop %v2201
        %v2203 = vmul.f32 %v2164, 1.442695
        %v2204 = vpow.pop %v2203
        %v2205 = vmul.f32 %v2165, 1.442695
        %v2206 = vpow.pop %v2205
        %v2207 = vmul.f32 %v2166, 1.442695
        %v2208 = vpow.pop %v2207
        %v2209 = vmul.f32 %v2167, 1.442695
        %v2210 = vpow.pop %v2209
        %v2211 = vmul.f32 %v2168, 1.442695
        %v2212 = vpow.pop %v2211
        %v2213 = vmul.f32 %v2169, 1.442695
        %v2214 = vpow.pop %v2213
        %v2215 = vmul.f32 %v2170, 1.442695
        %v2216 = vpow.pop %v2215
        %v2217 = vmul.f32 %v2171, 1.442695
        %v2218 = vpow.pop %v2217
        %v2219 = vmul.f32 %v2172, 1.442695
        %v2220 = vpow.pop %v2219
        %v2221 = vmul.f32 %v2173, 1.442695
        %v2222 = vpow.pop %v2221
        %v2223 = vmul.f32 %v2174, 1.442695
        %v2224 = vpow.pop %v2223
        %v2225 = vmul.f32 %v2175, 1.442695
        %v2226 = vpow.pop %v2225
        %v2227 = vmul.f32 %v2176, 1.442695
        %v2228 = vpow.pop %v2227
        %v2229 = vmul.f32 %v2177, 1.442695
        %v2230 = vpow.pop %v2229
        %v2231 = vmul.f32 %v2178, 1.442695
        %v2232 = vpow.pop %v2231
        %v2233 = vmul.f32 %v2179, 1.442695
        %v2234 = vpow.pop %v2233
        %v2235 = vmul.f32 %v2180, 1.442695
        %v2236 = vpow.pop %v2235
        %v2237 = vmul.f32 %v2181, 1.442695
        %v2238 = vpow.pop %v2237
        %v2239 = vmul.f32 %v2182, 1.442695
        %v2240 = vpow.pop %v2239
        %v2241 = vmul.f32 %v2183, 1.442695
        %v2242 = vpow.pop %v2241
        %v2243 = vmul.f32 %v2184, 1.442695
        %v2244 = vpow.pop %v2243
        %v2245 = vmul.f32 %v2185, 1.442695
        %v2246 = vpow.pop %v2245
        %v2247 = vmul.f32 %v2186, 1.442695
        %v2248 = vpow.pop %v2247
        %v2249 = vmul.f32 %v2187, 1.442695
        %v2250 = vpow.pop %v2249
        %v2251 = vmul.f32 %v2188, 1.442695
        %v2252 = vpow.pop %v2251
        %v2253 = vadd.f32 %v2190, 1.0
        %v2254 = vadd.f32 %v2192, 1.0
        %v2255 = vadd.f32 %v2194, 1.0
        %v2256 = vadd.f32 %v2196, 1.0
        %v2257 = vadd.f32 %v2198, 1.0
        %v2258 = vadd.f32 %v2200, 1.0
        %v2259 = vadd.f32 %v2202, 1.0
        %v2260 = vadd.f32 %v2204, 1.0
        %v2261 = vadd.f32 %v2206, 1.0
        %v2262 = vadd.f32 %v2208, 1.0
        %v2263 = vadd.f32 %v2210, 1.0
        %v2264 = vadd.f32 %v2212, 1.0
        %v2265 = vadd.f32 %v2214, 1.0
        %v2266 = vadd.f32 %v2216, 1.0
        %v2267 = vadd.f32 %v2218, 1.0
        %v2268 = vadd.f32 %v2220, 1.0
        %v2269 = vadd.f32 %v2222, 1.0
        %v2270 = vadd.f32 %v2224, 1.0
        %v2271 = vadd.f32 %v2226, 1.0
        %v2272 = vadd.f32 %v2228, 1.0
        %v2273 = vadd.f32 %v2230, 1.0
        %v2274 = vadd.f32 %v2232, 1.0
        %v2275 = vadd.f32 %v2234, 1.0
        %v2276 = vadd.f32 %v2236, 1.0
        %v2277 = vadd.f32 %v2238, 1.0
        %v2278 = vadd.f32 %v2240, 1.0
        %v2279 = vadd.f32 %v2242, 1.0
        %v2280 = vadd.f32 %v2244, 1.0
        %v2281 = vadd.f32 %v2246, 1.0
        %v2282 = vadd.f32 %v2248, 1.0
        %v2283 = vadd.f32 %v2250, 1.0
        %v2284 = vadd.f32 %v2252, 1.0
        %v2285 = vrcp.pop %v2253
        %v2286 = vmul.f32 1.0, %v2285
        %v2287 = vrcp.pop %v2254
        %v2288 = vmul.f32 1.0, %v2287
        %v2289 = vrcp.pop %v2255
        %v2290 = vmul.f32 1.0, %v2289
        %v2291 = vrcp.pop %v2256
        %v2292 = vmul.f32 1.0, %v2291
        %v2293 = vrcp.pop %v2257
        %v2294 = vmul.f32 1.0, %v2293
        %v2295 = vrcp.pop %v2258
        %v2296 = vmul.f32 1.0, %v2295
        %v2297 = vrcp.pop %v2259
        %v2298 = vmul.f32 1.0, %v2297
        %v2299 = vrcp.pop %v2260
        %v2300 = vmul.f32 1.0, %v2299
        %v2301 = vrcp.pop %v2261
        %v2302 = vmul.f32 1.0, %v2301
        %v2303 = vrcp.pop %v2262
        %v2304 = vmul.f32 1.0, %v2303
        %v2305 = vrcp.pop %v2263
        %v2306 = vmul.f32 1.0, %v2305
        %v2307 = vrcp.pop %v2264
        %v2308 = vmul.f32 1.0, %v2307
        %v2309 = vrcp.pop %v2265
        %v2310 = vmul.f32 1.0, %v2309
        %v2311 = vrcp.pop %v2266
        %v2312 = vmul.f32 1.0, %v2311
        %v2313 = vrcp.pop %v2267
        %v2314 = vmul.f32 1.0, %v2313
        %v2315 = vrcp.pop %v2268
        %v2316 = vmul.f32 1.0, %v2315
        %v2317 = vrcp.pop %v2269
        %v2318 = vmul.f32 1.0, %v2317
        %v2319 = vrcp.pop %v2270
        %v2320 = vmul.f32 1.0, %v2319
        %v2321 = vrcp.pop %v2271
        %v2322 = vmul.f32 1.0, %v2321
        %v2323 = vrcp.pop %v2272
        %v2324 = vmul.f32 1.0, %v2323
        %v2325 = vrcp.pop %v2273
        %v2326 = vmul.f32 1.0, %v2325
        %v2327 = vrcp.pop %v2274
        %v2328 = vmul.f32 1.0, %v2327
        %v2329 = vrcp.pop %v2275
        %v2330 = vmul.f32 1.0, %v2329
        %v2331 = vrcp.pop %v2276
        %v2332 = vmul.f32 1.0, %v2331
        %v2333 = vrcp.pop %v2277
        %v2334 = vmul.f32 1.0, %v2333
        %v2335 = vrcp.pop %v2278
        %v2336 = vmul.f32 1.0, %v2335
        %v2337 = vrcp.pop %v2279
        %v2338 = vmul.f32 1.0, %v2337
        %v2339 = vrcp.pop %v2280
        %v2340 = vmul.f32 1.0, %v2339
        %v2341 = vrcp.pop %v2281
        %v2342 = vmul.f32 1.0, %v2341
        %v2343 = vrcp.pop %v2282
        %v2344 = vmul.f32 1.0, %v2343
        %v2345 = vrcp.pop %v2283
        %v2346 = vmul.f32 1.0, %v2345
        %v2347 = vrcp.pop %v2284
        %v2348 = vmul.f32 1.0, %v2347
        %2349 = vst [vmem:[%s164] sm:$0xff] %v2286
        %2350 = vst [vmem:[%s164 + $0x8] sm:$0xff] %v2288
        %2351 = vst [vmem:[%s164 + $0x10] sm:$0xff] %v2290
        %2352 = vst [vmem:[%s164 + $0x18] sm:$0xff] %v2292
        %2353 = vst [vmem:[%s164 + $0x20] sm:$0xff] %v2294
        %2354 = vst [vmem:[%s164 + $0x28] sm:$0xff] %v2296
        %2355 = vst [vmem:[%s164 + $0x30] sm:$0xff] %v2298
        %2356 = vst [vmem:[%s164 + $0x38] sm:$0xff] %v2300
        %2357 = vst [vmem:[%s164 + $0x40] sm:$0xff] %v2302
        %2358 = vst [vmem:[%s164 + $0x48] sm:$0xff] %v2304
        %2359 = vst [vmem:[%s164 + $0x50] sm:$0xff] %v2306
        %2360 = vst [vmem:[%s164 + $0x58] sm:$0xff] %v2308
        %2361 = vst [vmem:[%s164 + $0x60] sm:$0xff] %v2310
        %2362 = vst [vmem:[%s164 + $0x68] sm:$0xff] %v2312
        %2363 = vst [vmem:[%s164 + $0x70] sm:$0xff] %v2314
        %2364 = vst [vmem:[%s164 + $0x78] sm:$0xff] %v2316
        %2365 = vst [vmem:[%s164 + $0x80] sm:$0xff] %v2318
        %2366 = vst [vmem:[%s164 + $0x88] sm:$0xff] %v2320
        %2367 = vst [vmem:[%s164 + $0x90] sm:$0xff] %v2322
        %2368 = vst [vmem:[%s164 + $0x98] sm:$0xff] %v2324
        %2369 = vst [vmem:[%s164 + $0xa0] sm:$0xff] %v2326
        %2370 = vst [vmem:[%s164 + $0xa8] sm:$0xff] %v2328
        %2371 = vst [vmem:[%s164 + $0xb0] sm:$0xff] %v2330
        %2372 = vst [vmem:[%s164 + $0xb8] sm:$0xff] %v2332
        %2373 = vst [vmem:[%s164 + $0xc0] sm:$0xff] %v2334
        %2374 = vst [vmem:[%s164 + $0xc8] sm:$0xff] %v2336
        %2375 = vst [vmem:[%s164 + $0xd0] sm:$0xff] %v2338
        %2376 = vst [vmem:[%s164 + $0xd8] sm:$0xff] %v2340
        %2377 = vst [vmem:[%s164 + $0xe0] sm:$0xff] %v2342
        %2378 = vst [vmem:[%s164 + $0xe8] sm:$0xff] %v2344
        %2379 = vst [vmem:[%s164 + $0xf0] sm:$0xff] %v2346
        %2380 = vst [vmem:[%s164 + $0xf8] sm:$0xff] %v2348
        %s2381 = sand.u32 %s93, 1
        %s2382 = scalar_lea.sflag [#allocation3], %s2381
        %s2383 = sand.u32 %s93, 1
        %s2384 = smul.addr %s2383, 256
        %s2385 = scalar_lea.vmem [#allocation2], %s2384
        // Predicated region
        $region33: #{tpu_custom_call.1} parent=31 // pred_check
          %p2386 = pneg %p103
        $region34: #{tpu_custom_call.1} parent=31 // pred_check_branch
          %2388 = sbr.rel (%p2386) target = $region36
        $region35: #{tpu_custom_call.1} parent=31 // pred_region
          %s2389 = smul.u32 32, %s17
          %s2391 = ssub.s32 4096, 4096
          %2392 = vsyncadd %s2382, %s2391
          %s2393 = smul.addr %s2389, 128
          %s2394 = scalar_lea.hbm %s3, %s2393
          %s2395 = sshll.u32 %s2385, 4
          %s2396 = int_to_ptr.vmem [resolvable:$true] %s2395
          %2401 = dma.vmem_to_hbm [thread:$0]  %s2396, 4096, %s2394, %s2382, 128, 128, 8
        $region36: #{tpu_custom_call.1} parent=31 // pred_fallthru
          _
      $region32: #{tpu_custom_call.1} parent=5 // pred_fallthru
        _
      %p2402 = scmp.le.s32.totalorder 2, %s12
      // Predicated region
      $region37: #{tpu_custom_call.1} parent=5 // pred_check
        %p2403 = pneg %p2402
      $region38: #{tpu_custom_call.1} parent=5 // pred_check_branch
        %2405 = sbr.rel (%p2403) target = $region40
      $region39: #{tpu_custom_call.1} parent=5 // pred_region
        %s2406 = ssub.s32 %s12, 2
        // Predicated region
        $region41: #{tpu_custom_call.1} parent=39 // pred_check
          %p2407 = pneg %p109
        $region42: #{tpu_custom_call.1} parent=39 // pred_check_branch
          %2409 = sbr.rel (%p2407) target = $region44
        $region43: #{tpu_custom_call.1} parent=39 // pred_region
          %s2410 = sand.u32 %s94, 1
          %s2411 = scalar_lea.sflag [#allocation3], %s2410
          %s2412 = sand.u32 %s94, 1
          %s2413 = smul.addr %s2412, 256
          %s2414 = scalar_lea.vmem [#allocation2], %s2413
          %2415 = dma.done %s2411, 4096
        $region44: #{tpu_custom_call.1} parent=39 // pred_fallthru
          _
      $region40: #{tpu_custom_call.1} parent=5 // pred_fallthru
        _
    $region6: #{tpu_custom_call.1} parent=1 // loop_footer
      %s16 = sadd.s32 1, %s12
    $region7: #{tpu_custom_call.1} parent=1 // loop_footer_branch
      %11 = sbr.rel target = $region3
    $region8: #{tpu_custom_call.1} parent=1 // loop_exit
      _
    %2416 = vsyncpa [#allocation3], 1
    %s2417 = scalar_lea.sflag [#allocation3], 1
    %2418 = vsyncpa %s2417, 1

</llo_original>
